<compile_context>
chip_gen: v6e
topology: v6e:2x2x1
jax: 0.10.0
libtpu: 0.0.40
codegen_flags: <defaults>
</compile_context>

<pallas_src>
import jax
import jax.numpy as jnp
from jax.experimental import pallas as pl
from jax.experimental.pallas import tpu as pltpu

_COMPUTE_DTYPE = jnp.bfloat16  # MXU operand dtype (f32 accumulation / epilogue)


def _fused_conv_sigmoid_kernel(x_ref, w1_ref, b1_ref, w2_ref, b2_ref,
                               w3_ref, b3_ref, w4_ref, b4_ref, o_ref):
    """Four fused conv(2x2, stride 2) + sigmoid layers for one image.

    x_ref : (1, H, W//2, 2*Cin)  compute dtype, packed as x[h, wo, kw*Cin + c]
    wK_ref: (2, 2*CinK, CoutK)   compute dtype, packed as w[kh, kw*CinK + c, o]
    bK_ref: (1, CoutK)           float32
    o_ref : (1, Ho4*Wo4, Cout4)  float32
    All intermediates stay in VMEM / vregs.
    """
    a = x_ref[0]                                   # (H, W//2, 2*Cin)
    compute_dtype = a.dtype
    layers = ((w1_ref, b1_ref), (w2_ref, b2_ref),
              (w3_ref, b3_ref), (w4_ref, b4_ref))
    n_layers = len(layers)

    for i, (w_ref, b_ref) in enumerate(layers):
        h, wo, two_cin = a.shape
        ho = h // 2
        cout = w_ref.shape[-1]

        # kh split: even / odd input rows (kw is already packed into the lane dim).
        a4 = a.reshape(ho, 2, wo, two_cin)
        top = a4[:, 0, :, :].reshape(ho * wo, two_cin)
        bot = a4[:, 1, :, :].reshape(ho * wo, two_cin)

        # Conv as two MXU matmuls, accumulated in f32; bias + sigmoid in f32.
        z = jnp.dot(top, w_ref[0], preferred_element_type=jnp.float32)
        z = z + jnp.dot(bot, w_ref[1], preferred_element_type=jnp.float32)
        z = z + b_ref[...]
        y = 1.0 / (1.0 + jnp.exp(-z))              # sigmoid, (ho*wo, cout) f32

        if i + 1 < n_layers:
            # Repack (ho*wo, cout) -> (ho, wo//2, 2*cout): the next layer's
            # column-pair packed input format (adjacent output columns go to lanes).
            y3 = y.reshape(ho, wo, cout)
            y4 = y3.reshape(ho, wo // 2, 2, cout)
            a = jnp.concatenate([y4[:, :, 0, :], y4[:, :, 1, :]],
                                axis=-1).astype(compute_dtype)
        else:
            o_ref[...] = y.reshape(1, ho * wo, cout).astype(o_ref.dtype)


def _prep_weight(w):
    # (Cout, Cin, 2, 2) PyTorch OIHW -> (2, 2*Cin, Cout); contraction order (kw, cin).
    cout, cin = w.shape[0], w.shape[1]
    return w.transpose(2, 3, 1, 0).reshape(2, 2 * cin, cout).astype(_COMPUTE_DTYPE)


def _prep_bias(b):
    return b.reshape(1, -1).astype(jnp.float32)


@jax.jit
def fused_conv_net(x_nchw, params):
    """4x [Conv2d(k=2, s=2, no pad) + sigmoid], fused in one Pallas kernel.

    x_nchw: (N, Cin, H, W) with H, W divisible by 16 (four stride-2 convs).
    params: ((w1,b1), (w2,b2), (w3,b3), (w4,b4)) in PyTorch OIHW / (Cout,) layout.
    Returns (N, Cout4, H//16, W//16) float32.
    """
    N, cin, H, W = x_nchw.shape
    if H % 16 or W % 16:
        raise ValueError("H and W must be divisible by 16 (four stride-2 convs)")

    # NCHW -> NHWC -> pack adjacent column pairs into the lane dim (free reshape).
    x = jnp.transpose(x_nchw, (0, 2, 3, 1)).reshape(N, H, W // 2, 2 * cin)
    x = x.astype(_COMPUTE_DTYPE)

    ws = [_prep_weight(w) for w, _ in params]
    bs = [_prep_bias(b) for _, b in params]

    cout4 = ws[-1].shape[-1]
    ho4, wo4 = H // 16, W // 16
    r4 = ho4 * wo4

    # Advisory cost estimate (flops / transcendentals / HBM bytes).
    flops, trans = 0, 0
    hc, wc, cc = H, W, cin
    for w in ws:
        co = w.shape[-1]
        hc, wc = hc // 2, wc // 2
        flops += 2 * N * hc * wc * (4 * cc) * co
        trans += N * hc * wc * co
        cc = co
    bytes_accessed = (x.size * x.dtype.itemsize
                      + sum(w.size * w.dtype.itemsize for w in ws)
                      + sum(b.size * b.dtype.itemsize for b in bs)
                      + N * r4 * cout4 * 4)

    def w_spec(a):
        return pl.BlockSpec(a.shape, lambda n: (0, 0, 0))

    def b_spec(a):
        return pl.BlockSpec(a.shape, lambda n: (0, 0))

    out = pl.pallas_call(
        _fused_conv_sigmoid_kernel,
        out_shape=jax.ShapeDtypeStruct((N, r4, cout4), jnp.float32),
        grid=(N,),
        in_specs=[
            pl.BlockSpec((1, H, W // 2, 2 * cin), lambda n: (n, 0, 0, 0)),
            w_spec(ws[0]), b_spec(bs[0]),
            w_spec(ws[1]), b_spec(bs[1]),
            w_spec(ws[2]), b_spec(bs[2]),
            w_spec(ws[3]), b_spec(bs[3]),
        ],
        out_specs=pl.BlockSpec((1, r4, cout4), lambda n: (n, 0, 0)),
        compiler_params=pltpu.CompilerParams(
            dimension_semantics=("parallel",)),
        cost_estimate=pl.CostEstimate(flops=flops, transcendentals=trans,
                                      bytes_accessed=bytes_accessed),
    )(x, ws[0], bs[0], ws[1], bs[1], ws[2], bs[2], ws[3], bs[3])

    # (N, Ho4*Wo4, Cout4) -> NCHW
    return out.reshape(N, ho4, wo4, cout4).transpose(0, 3, 1, 2)


def init_conv_params(key, cin, cout, k=2):
    """Deterministic init mimicking PyTorch Conv2d default (uniform +-1/sqrt(fan_in))."""
    kw_key, kb_key = jax.random.split(key)
    fan_in = cin * k * k
    bound = 1.0 / (fan_in ** 0.5)
    w = jax.random.uniform(kw_key, (cout, cin, k, k), jnp.float32, -bound, bound)
    b = jax.random.uniform(kb_key, (cout,), jnp.float32, -bound, bound)
    return w, b


class PallasModel:
    """conv1(64->16) -> sigmoid -> conv2(16->8) -> sigmoid ->
       conv3(8->4)  -> sigmoid -> conv4(4->1) -> sigmoid
       (all convs: kernel_size=2, stride=2, no padding), fused in one Pallas kernel."""

    def __init__(self, key, in_channels=64, output_features=1):
        keys = jax.random.split(key, 4)
        self.params = (
            init_conv_params(keys[0], in_channels, 16),
            init_conv_params(keys[1], 16, 8),
            init_conv_params(keys[2], 8, 4),
            init_conv_params(keys[3], 4, output_features),
        )

    def __call__(self, x_nchw):
        return fused_conv_net(x_nchw, self.params)


def reference_forward(x_nchw, params):
    """Pure-JAX f32 reference matching the PyTorch module."""
    x = x_nchw
    for w, b in params:
        x = jax.lax.conv_general_dilated(
            x, w, window_strides=(2, 2), padding="VALID",
            dimension_numbers=("NCHW", "OIHW", "NCHW"))
        x = jax.nn.sigmoid(x + b.reshape(1, -1, 1, 1))
    return x


if __name__ == "__main__":
    key = jax.random.PRNGKey(0)
    k_param, k_x = jax.random.split(key)

    # conv1 expects 64 input channels; spatial 16 -> 8 -> 4 -> 2 -> 1.
    N, C, H, W = 2, 64, 16, 16
    x = jax.random.normal(k_x, (N, C, H, W), jnp.float32)

    model = PallasModel(k_param, in_channels=C, output_features=1)
    out = jax.block_until_ready(model(x))

    assert out.shape == (N, 1, 1, 1), out.shape
    assert jnp.all((out >= 0.0) & (out <= 1.0))  # sigmoid output range

    ref = jax.block_until_ready(reference_forward(x, model.params))
    max_err = float(jnp.max(jnp.abs(out - ref)))
    # bf16 MXU operands => small deviation vs. f32 reference (well under 3e-2).
    assert max_err < 3e-2, f"max abs err vs f32 reference: {max_err}"

    print("KERNEL_OK")
</pallas_src>

<mosaic_0001>
module attributes {stable_mosaic.version = 11 : i64} {
  func.func @_fused_conv_sigmoid_kernel(%arg0: i32, %arg1: memref<1x16x8x128xbf16, #tpu.memory_space<vmem>>, %arg2: memref<2x128x16xbf16, #tpu.memory_space<vmem>>, %arg3: memref<1x16xf32, #tpu.memory_space<vmem>>, %arg4: memref<2x32x8xbf16, #tpu.memory_space<vmem>>, %arg5: memref<1x8xf32, #tpu.memory_space<vmem>>, %arg6: memref<2x16x4xbf16, #tpu.memory_space<vmem>>, %arg7: memref<1x4xf32, #tpu.memory_space<vmem>>, %arg8: memref<2x8x1xbf16, #tpu.memory_space<vmem>>, %arg9: memref<1x1xf32, #tpu.memory_space<vmem>>, %arg10: memref<1x1x1xf32, #tpu.memory_space<vmem>>) attributes {dimension_semantics = [#tpu.dimension_semantics<parallel>], iteration_bounds = array<i64: 2>, scalar_prefetch = 0 : i64, scratch_operands = 0 : i64, tpu.core_type = #tpu.core_type<tc>, window_params = [{transform_indices = @transform_0, window_bounds = array<i64: 1, 16, 8, 128>}, {pipeline_mode = #tpu.pipeline_mode<synchronous>, transform_indices = @transform_1, window_bounds = array<i64: 2, 128, 16>}, {pipeline_mode = #tpu.pipeline_mode<synchronous>, transform_indices = @transform_2, window_bounds = array<i64: 1, 16>}, {pipeline_mode = #tpu.pipeline_mode<synchronous>, transform_indices = @transform_3, window_bounds = array<i64: 2, 32, 8>}, {pipeline_mode = #tpu.pipeline_mode<synchronous>, transform_indices = @transform_4, window_bounds = array<i64: 1, 8>}, {pipeline_mode = #tpu.pipeline_mode<synchronous>, transform_indices = @transform_5, window_bounds = array<i64: 2, 16, 4>}, {pipeline_mode = #tpu.pipeline_mode<synchronous>, transform_indices = @transform_6, window_bounds = array<i64: 1, 4>}, {pipeline_mode = #tpu.pipeline_mode<synchronous>, transform_indices = @transform_7, window_bounds = array<i64: 2, 8, 1>}, {pipeline_mode = #tpu.pipeline_mode<synchronous>, transform_indices = @transform_8, window_bounds = array<i64: 1, 1>}, {transform_indices = @transform_9, window_bounds = array<i64: 1, 1, 1>}]} {
    %c0 = arith.constant 0 : index
    %c0_0 = arith.constant 0 : index
    %c0_1 = arith.constant 0 : index
    %c0_2 = arith.constant 0 : index
    %0 = vector.load %arg1[%c0, %c0_0, %c0_1, %c0_2] : memref<1x16x8x128xbf16, #tpu.memory_space<vmem>>, vector<1x16x8x128xbf16>
    %1 = vector.shape_cast %0 : vector<1x16x8x128xbf16> to vector<16x8x128xbf16>
    %2 = vector.shape_cast %1 : vector<16x8x128xbf16> to vector<8x2x8x128xbf16>
    %3 = vector.extract_strided_slice %2 {offsets = [0, 0, 0, 0], sizes = [8, 1, 8, 128], strides = [1, 1, 1, 1]} : vector<8x2x8x128xbf16> to vector<8x1x8x128xbf16>
    %4 = vector.shape_cast %3 : vector<8x1x8x128xbf16> to vector<8x8x128xbf16>
    %5 = vector.shape_cast %4 : vector<8x8x128xbf16> to vector<64x128xbf16>
    %6 = vector.extract_strided_slice %2 {offsets = [0, 1, 0, 0], sizes = [8, 1, 8, 128], strides = [1, 1, 1, 1]} : vector<8x2x8x128xbf16> to vector<8x1x8x128xbf16>
    %7 = vector.shape_cast %6 : vector<8x1x8x128xbf16> to vector<8x8x128xbf16>
    %8 = vector.shape_cast %7 : vector<8x8x128xbf16> to vector<64x128xbf16>
    %c0_3 = arith.constant 0 : index
    %c0_4 = arith.constant 0 : index
    %c0_5 = arith.constant 0 : index
    %9 = vector.load %arg2[%c0_3, %c0_4, %c0_5] : memref<2x128x16xbf16, #tpu.memory_space<vmem>>, vector<1x128x16xbf16>
    %10 = vector.shape_cast %9 : vector<1x128x16xbf16> to vector<128x16xbf16>
    %cst = arith.constant dense<0.000000e+00> : vector<64x16xf32>
    %11 = tpu.matmul %5, %10, %cst {dimension_numbers = #tpu.dot_dimension_numbers<[1], [0], [0], [1], [0, 0, 1, 1], [], []>} : vector<64x128xbf16>, vector<128x16xbf16>, vector<64x16xf32> -> vector<64x16xf32>
    %c1 = arith.constant 1 : index
    %c0_6 = arith.constant 0 : index
    %c0_7 = arith.constant 0 : index
    %12 = vector.load %arg2[%c1, %c0_6, %c0_7] : memref<2x128x16xbf16, #tpu.memory_space<vmem>>, vector<1x128x16xbf16>
    %13 = vector.shape_cast %12 : vector<1x128x16xbf16> to vector<128x16xbf16>
    %cst_8 = arith.constant dense<0.000000e+00> : vector<64x16xf32>
    %14 = tpu.matmul %8, %13, %cst_8 {dimension_numbers = #tpu.dot_dimension_numbers<[1], [0], [0], [1], [0, 0, 1, 1], [], []>} : vector<64x128xbf16>, vector<128x16xbf16>, vector<64x16xf32> -> vector<64x16xf32>
    %15 = arith.addf %11, %14 : vector<64x16xf32>
    %c0_9 = arith.constant 0 : index
    %c0_10 = arith.constant 0 : index
    %16 = vector.load %arg3[%c0_9, %c0_10] : memref<1x16xf32, #tpu.memory_space<vmem>>, vector<1x16xf32>
    %17 = vector.broadcast %16 : vector<1x16xf32> to vector<64x16xf32>
    %18 = arith.addf %15, %17 : vector<64x16xf32>
    %cst_11 = arith.constant 0.000000e+00 : f32
    %19 = vector.broadcast %cst_11 : f32 to vector<64x16xf32>
    %20 = arith.subf %19, %18 : vector<64x16xf32>
    %21 = math.exp %20 : vector<64x16xf32>
    %cst_12 = arith.constant 1.000000e+00 : f32
    %22 = vector.broadcast %cst_12 : f32 to vector<64x16xf32>
    %23 = arith.addf %22, %21 : vector<64x16xf32>
    %cst_13 = arith.constant 1.000000e+00 : f32
    %24 = vector.broadcast %cst_13 : f32 to vector<64x16xf32>
    %25 = arith.divf %24, %23 : vector<64x16xf32>
    %26 = vector.shape_cast %25 : vector<64x16xf32> to vector<8x8x16xf32>
    %27 = vector.shape_cast %26 : vector<8x8x16xf32> to vector<8x4x2x16xf32>
    %28 = vector.extract_strided_slice %27 {offsets = [0, 0, 0, 0], sizes = [8, 4, 1, 16], strides = [1, 1, 1, 1]} : vector<8x4x2x16xf32> to vector<8x4x1x16xf32>
    %29 = vector.shape_cast %28 : vector<8x4x1x16xf32> to vector<8x4x16xf32>
    %30 = vector.extract_strided_slice %27 {offsets = [0, 0, 1, 0], sizes = [8, 4, 1, 16], strides = [1, 1, 1, 1]} : vector<8x4x2x16xf32> to vector<8x4x1x16xf32>
    %31 = vector.shape_cast %30 : vector<8x4x1x16xf32> to vector<8x4x16xf32>
    %32 = tpu.concatenate %29, %31 in 2 : vector<8x4x16xf32>, vector<8x4x16xf32> -> vector<8x4x32xf32>
    %33 = arith.truncf %32 : vector<8x4x32xf32> to vector<8x4x32xbf16>
    %34 = vector.shape_cast %33 : vector<8x4x32xbf16> to vector<4x2x4x32xbf16>
    %35 = vector.extract_strided_slice %34 {offsets = [0, 0, 0, 0], sizes = [4, 1, 4, 32], strides = [1, 1, 1, 1]} : vector<4x2x4x32xbf16> to vector<4x1x4x32xbf16>
    %36 = vector.shape_cast %35 : vector<4x1x4x32xbf16> to vector<4x4x32xbf16>
    %37 = vector.shape_cast %36 : vector<4x4x32xbf16> to vector<16x32xbf16>
    %38 = vector.extract_strided_slice %34 {offsets = [0, 1, 0, 0], sizes = [4, 1, 4, 32], strides = [1, 1, 1, 1]} : vector<4x2x4x32xbf16> to vector<4x1x4x32xbf16>
    %39 = vector.shape_cast %38 : vector<4x1x4x32xbf16> to vector<4x4x32xbf16>
    %40 = vector.shape_cast %39 : vector<4x4x32xbf16> to vector<16x32xbf16>
    %c0_14 = arith.constant 0 : index
    %c0_15 = arith.constant 0 : index
    %c0_16 = arith.constant 0 : index
    %41 = vector.load %arg4[%c0_14, %c0_15, %c0_16] : memref<2x32x8xbf16, #tpu.memory_space<vmem>>, vector<1x32x8xbf16>
    %42 = vector.shape_cast %41 : vector<1x32x8xbf16> to vector<32x8xbf16>
    %cst_17 = arith.constant dense<0.000000e+00> : vector<16x8xf32>
    %43 = tpu.matmul %37, %42, %cst_17 {dimension_numbers = #tpu.dot_dimension_numbers<[1], [0], [0], [1], [0, 0, 1, 1], [], []>} : vector<16x32xbf16>, vector<32x8xbf16>, vector<16x8xf32> -> vector<16x8xf32>
    %c1_18 = arith.constant 1 : index
    %c0_19 = arith.constant 0 : index
    %c0_20 = arith.constant 0 : index
    %44 = vector.load %arg4[%c1_18, %c0_19, %c0_20] : memref<2x32x8xbf16, #tpu.memory_space<vmem>>, vector<1x32x8xbf16>
    %45 = vector.shape_cast %44 : vector<1x32x8xbf16> to vector<32x8xbf16>
    %cst_21 = arith.constant dense<0.000000e+00> : vector<16x8xf32>
    %46 = tpu.matmul %40, %45, %cst_21 {dimension_numbers = #tpu.dot_dimension_numbers<[1], [0], [0], [1], [0, 0, 1, 1], [], []>} : vector<16x32xbf16>, vector<32x8xbf16>, vector<16x8xf32> -> vector<16x8xf32>
    %47 = arith.addf %43, %46 : vector<16x8xf32>
    %c0_22 = arith.constant 0 : index
    %c0_23 = arith.constant 0 : index
    %48 = vector.load %arg5[%c0_22, %c0_23] : memref<1x8xf32, #tpu.memory_space<vmem>>, vector<1x8xf32>
    %49 = vector.broadcast %48 : vector<1x8xf32> to vector<16x8xf32>
    %50 = arith.addf %47, %49 : vector<16x8xf32>
    %cst_24 = arith.constant 0.000000e+00 : f32
    %51 = vector.broadcast %cst_24 : f32 to vector<16x8xf32>
    %52 = arith.subf %51, %50 : vector<16x8xf32>
    %53 = math.exp %52 : vector<16x8xf32>
    %cst_25 = arith.constant 1.000000e+00 : f32
    %54 = vector.broadcast %cst_25 : f32 to vector<16x8xf32>
    %55 = arith.addf %54, %53 : vector<16x8xf32>
    %cst_26 = arith.constant 1.000000e+00 : f32
    %56 = vector.broadcast %cst_26 : f32 to vector<16x8xf32>
    %57 = arith.divf %56, %55 : vector<16x8xf32>
    %58 = vector.shape_cast %57 : vector<16x8xf32> to vector<4x4x8xf32>
    %59 = vector.shape_cast %58 : vector<4x4x8xf32> to vector<4x2x2x8xf32>
    %60 = vector.extract_strided_slice %59 {offsets = [0, 0, 0, 0], sizes = [4, 2, 1, 8], strides = [1, 1, 1, 1]} : vector<4x2x2x8xf32> to vector<4x2x1x8xf32>
    %61 = vector.shape_cast %60 : vector<4x2x1x8xf32> to vector<4x2x8xf32>
    %62 = vector.extract_strided_slice %59 {offsets = [0, 0, 1, 0], sizes = [4, 2, 1, 8], strides = [1, 1, 1, 1]} : vector<4x2x2x8xf32> to vector<4x2x1x8xf32>
    %63 = vector.shape_cast %62 : vector<4x2x1x8xf32> to vector<4x2x8xf32>
    %64 = tpu.concatenate %61, %63 in 2 : vector<4x2x8xf32>, vector<4x2x8xf32> -> vector<4x2x16xf32>
    %65 = arith.truncf %64 : vector<4x2x16xf32> to vector<4x2x16xbf16>
    %66 = vector.shape_cast %65 : vector<4x2x16xbf16> to vector<2x2x2x16xbf16>
    %67 = vector.extract_strided_slice %66 {offsets = [0, 0, 0, 0], sizes = [2, 1, 2, 16], strides = [1, 1, 1, 1]} : vector<2x2x2x16xbf16> to vector<2x1x2x16xbf16>
    %68 = vector.shape_cast %67 : vector<2x1x2x16xbf16> to vector<2x2x16xbf16>
    %69 = vector.shape_cast %68 : vector<2x2x16xbf16> to vector<4x16xbf16>
    %70 = vector.extract_strided_slice %66 {offsets = [0, 1, 0, 0], sizes = [2, 1, 2, 16], strides = [1, 1, 1, 1]} : vector<2x2x2x16xbf16> to vector<2x1x2x16xbf16>
    %71 = vector.shape_cast %70 : vector<2x1x2x16xbf16> to vector<2x2x16xbf16>
    %72 = vector.shape_cast %71 : vector<2x2x16xbf16> to vector<4x16xbf16>
    %c0_27 = arith.constant 0 : index
    %c0_28 = arith.constant 0 : index
    %c0_29 = arith.constant 0 : index
    %73 = vector.load %arg6[%c0_27, %c0_28, %c0_29] : memref<2x16x4xbf16, #tpu.memory_space<vmem>>, vector<1x16x4xbf16>
    %74 = vector.shape_cast %73 : vector<1x16x4xbf16> to vector<16x4xbf16>
    %cst_30 = arith.constant dense<0.000000e+00> : vector<4x4xf32>
    %75 = tpu.matmul %69, %74, %cst_30 {dimension_numbers = #tpu.dot_dimension_numbers<[1], [0], [0], [1], [0, 0, 1, 1], [], []>} : vector<4x16xbf16>, vector<16x4xbf16>, vector<4x4xf32> -> vector<4x4xf32>
    %c1_31 = arith.constant 1 : index
    %c0_32 = arith.constant 0 : index
    %c0_33 = arith.constant 0 : index
    %76 = vector.load %arg6[%c1_31, %c0_32, %c0_33] : memref<2x16x4xbf16, #tpu.memory_space<vmem>>, vector<1x16x4xbf16>
    %77 = vector.shape_cast %76 : vector<1x16x4xbf16> to vector<16x4xbf16>
    %cst_34 = arith.constant dense<0.000000e+00> : vector<4x4xf32>
    %78 = tpu.matmul %72, %77, %cst_34 {dimension_numbers = #tpu.dot_dimension_numbers<[1], [0], [0], [1], [0, 0, 1, 1], [], []>} : vector<4x16xbf16>, vector<16x4xbf16>, vector<4x4xf32> -> vector<4x4xf32>
    %79 = arith.addf %75, %78 : vector<4x4xf32>
    %c0_35 = arith.constant 0 : index
    %c0_36 = arith.constant 0 : index
    %80 = vector.load %arg7[%c0_35, %c0_36] : memref<1x4xf32, #tpu.memory_space<vmem>>, vector<1x4xf32>
    %81 = vector.broadcast %80 : vector<1x4xf32> to vector<4x4xf32>
    %82 = arith.addf %79, %81 : vector<4x4xf32>
    %cst_37 = arith.constant 0.000000e+00 : f32
    %83 = vector.broadcast %cst_37 : f32 to vector<4x4xf32>
    %84 = arith.subf %83, %82 : vector<4x4xf32>
    %85 = math.exp %84 : vector<4x4xf32>
    %cst_38 = arith.constant 1.000000e+00 : f32
    %86 = vector.broadcast %cst_38 : f32 to vector<4x4xf32>
    %87 = arith.addf %86, %85 : vector<4x4xf32>
    %cst_39 = arith.constant 1.000000e+00 : f32
    %88 = vector.broadcast %cst_39 : f32 to vector<4x4xf32>
    %89 = arith.divf %88, %87 : vector<4x4xf32>
    %90 = vector.shape_cast %89 : vector<4x4xf32> to vector<2x2x4xf32>
    %91 = vector.shape_cast %90 : vector<2x2x4xf32> to vector<2x1x2x4xf32>
    %92 = vector.extract_strided_slice %91 {offsets = [0, 0, 0, 0], sizes = [2, 1, 1, 4], strides = [1, 1, 1, 1]} : vector<2x1x2x4xf32> to vector<2x1x1x4xf32>
    %93 = vector.shape_cast %92 : vector<2x1x1x4xf32> to vector<2x1x4xf32>
    %94 = vector.extract_strided_slice %91 {offsets = [0, 0, 1, 0], sizes = [2, 1, 1, 4], strides = [1, 1, 1, 1]} : vector<2x1x2x4xf32> to vector<2x1x1x4xf32>
    %95 = vector.shape_cast %94 : vector<2x1x1x4xf32> to vector<2x1x4xf32>
    %96 = tpu.concatenate %93, %95 in 2 : vector<2x1x4xf32>, vector<2x1x4xf32> -> vector<2x1x8xf32>
    %97 = arith.truncf %96 : vector<2x1x8xf32> to vector<2x1x8xbf16>
    %98 = vector.shape_cast %97 : vector<2x1x8xbf16> to vector<1x2x1x8xbf16>
    %99 = vector.extract_strided_slice %98 {offsets = [0, 0, 0, 0], sizes = [1, 1, 1, 8], strides = [1, 1, 1, 1]} : vector<1x2x1x8xbf16> to vector<1x1x1x8xbf16>
    %100 = vector.shape_cast %99 : vector<1x1x1x8xbf16> to vector<1x1x8xbf16>
    %101 = vector.shape_cast %100 : vector<1x1x8xbf16> to vector<1x8xbf16>
    %102 = vector.extract_strided_slice %98 {offsets = [0, 1, 0, 0], sizes = [1, 1, 1, 8], strides = [1, 1, 1, 1]} : vector<1x2x1x8xbf16> to vector<1x1x1x8xbf16>
    %103 = vector.shape_cast %102 : vector<1x1x1x8xbf16> to vector<1x1x8xbf16>
    %104 = vector.shape_cast %103 : vector<1x1x8xbf16> to vector<1x8xbf16>
    %c0_40 = arith.constant 0 : index
    %c0_41 = arith.constant 0 : index
    %c0_42 = arith.constant 0 : index
    %105 = vector.load %arg8[%c0_40, %c0_41, %c0_42] : memref<2x8x1xbf16, #tpu.memory_space<vmem>>, vector<1x8x1xbf16>
    %106 = vector.shape_cast %105 : vector<1x8x1xbf16> to vector<8x1xbf16>
    %cst_43 = arith.constant dense<0.000000e+00> : vector<1x1xf32>
    %107 = tpu.matmul %101, %106, %cst_43 {dimension_numbers = #tpu.dot_dimension_numbers<[1], [0], [0], [1], [0, 0, 1, 1], [], []>} : vector<1x8xbf16>, vector<8x1xbf16>, vector<1x1xf32> -> vector<1x1xf32>
    %c1_44 = arith.constant 1 : index
    %c0_45 = arith.constant 0 : index
    %c0_46 = arith.constant 0 : index
    %108 = vector.load %arg8[%c1_44, %c0_45, %c0_46] : memref<2x8x1xbf16, #tpu.memory_space<vmem>>, vector<1x8x1xbf16>
    %109 = vector.shape_cast %108 : vector<1x8x1xbf16> to vector<8x1xbf16>
    %cst_47 = arith.constant dense<0.000000e+00> : vector<1x1xf32>
    %110 = tpu.matmul %104, %109, %cst_47 {dimension_numbers = #tpu.dot_dimension_numbers<[1], [0], [0], [1], [0, 0, 1, 1], [], []>} : vector<1x8xbf16>, vector<8x1xbf16>, vector<1x1xf32> -> vector<1x1xf32>
    %111 = arith.addf %107, %110 : vector<1x1xf32>
    %c0_48 = arith.constant 0 : index
    %c0_49 = arith.constant 0 : index
    %112 = vector.load %arg9[%c0_48, %c0_49] : memref<1x1xf32, #tpu.memory_space<vmem>>, vector<1x1xf32>
    %113 = arith.addf %111, %112 : vector<1x1xf32>
    %cst_50 = arith.constant 0.000000e+00 : f32
    %114 = vector.broadcast %cst_50 : f32 to vector<1x1xf32>
    %115 = arith.subf %114, %113 : vector<1x1xf32>
    %116 = math.exp %115 : vector<1x1xf32>
    %cst_51 = arith.constant 1.000000e+00 : f32
    %117 = vector.broadcast %cst_51 : f32 to vector<1x1xf32>
    %118 = arith.addf %117, %116 : vector<1x1xf32>
    %cst_52 = arith.constant 1.000000e+00 : f32
    %119 = vector.broadcast %cst_52 : f32 to vector<1x1xf32>
    %120 = arith.divf %119, %118 : vector<1x1xf32>
    %121 = vector.shape_cast %120 : vector<1x1xf32> to vector<1x1x1xf32>
    %c0_53 = arith.constant 0 : index
    %c0_54 = arith.constant 0 : index
    %c0_55 = arith.constant 0 : index
    %122 = vector.load %arg10[%c0_53, %c0_54, %c0_55] : memref<1x1x1xf32, #tpu.memory_space<vmem>>, vector<1x1x1xf32>
    tpu.vector_store %arg10[%c0_53, %c0_54, %c0_55], %121 {strides = array<i32>} : memref<1x1x1xf32, #tpu.memory_space<vmem>>, vector<1x1x1xf32>,
    return
  }
  func.func @transform_0(%arg0: i32) -> (i32, i32, i32, i32) {
    %c0_i32 = arith.constant 0 : i32
    %c0_i32_0 = arith.constant 0 : i32
    %c0_i32_1 = arith.constant 0 : i32
    %c0_i32_2 = arith.constant 0 : i32
    return %arg0, %c0_i32, %c0_i32_0, %c0_i32_1 : i32, i32, i32, i32
  }
  func.func @transform_1(%arg0: i32) -> (i32, i32, i32) {
    %c0_i32 = arith.constant 0 : i32
    %c0_i32_0 = arith.constant 0 : i32
    %c0_i32_1 = arith.constant 0 : i32
    %c0_i32_2 = arith.constant 0 : i32
    return %c0_i32, %c0_i32_0, %c0_i32_1 : i32, i32, i32
  }
  func.func @transform_2(%arg0: i32) -> (i32, i32) {
    %c0_i32 = arith.constant 0 : i32
    %c0_i32_0 = arith.constant 0 : i32
    %c0_i32_1 = arith.constant 0 : i32
    return %c0_i32, %c0_i32_0 : i32, i32
  }
  func.func @transform_3(%arg0: i32) -> (i32, i32, i32) {
    %c0_i32 = arith.constant 0 : i32
    %c0_i32_0 = arith.constant 0 : i32
    %c0_i32_1 = arith.constant 0 : i32
    %c0_i32_2 = arith.constant 0 : i32
    return %c0_i32, %c0_i32_0, %c0_i32_1 : i32, i32, i32
  }
  func.func @transform_4(%arg0: i32) -> (i32, i32) {
    %c0_i32 = arith.constant 0 : i32
    %c0_i32_0 = arith.constant 0 : i32
    %c0_i32_1 = arith.constant 0 : i32
    return %c0_i32, %c0_i32_0 : i32, i32
  }
  func.func @transform_5(%arg0: i32) -> (i32, i32, i32) {
    %c0_i32 = arith.constant 0 : i32
    %c0_i32_0 = arith.constant 0 : i32
    %c0_i32_1 = arith.constant 0 : i32
    %c0_i32_2 = arith.constant 0 : i32
    return %c0_i32, %c0_i32_0, %c0_i32_1 : i32, i32, i32
  }
  func.func @transform_6(%arg0: i32) -> (i32, i32) {
    %c0_i32 = arith.constant 0 : i32
    %c0_i32_0 = arith.constant 0 : i32
    %c0_i32_1 = arith.constant 0 : i32
    return %c0_i32, %c0_i32_0 : i32, i32
  }
  func.func @transform_7(%arg0: i32) -> (i32, i32, i32) {
    %c0_i32 = arith.constant 0 : i32
    %c0_i32_0 = arith.constant 0 : i32
    %c0_i32_1 = arith.constant 0 : i32
    %c0_i32_2 = arith.constant 0 : i32
    return %c0_i32, %c0_i32_0, %c0_i32_1 : i32, i32, i32
  }
  func.func @transform_8(%arg0: i32) -> (i32, i32) {
    %c0_i32 = arith.constant 0 : i32
    %c0_i32_0 = arith.constant 0 : i32
    %c0_i32_1 = arith.constant 0 : i32
    return %c0_i32, %c0_i32_0 : i32, i32
  }
  func.func @transform_9(%arg0: i32) -> (i32, i32, i32) {
    %c0_i32 = arith.constant 0 : i32
    %c0_i32_0 = arith.constant 0 : i32
    %c0_i32_1 = arith.constant 0 : i32
    return %arg0, %c0_i32, %c0_i32_0 : i32, i32, i32
  }
}

</mosaic_0001>

<llo_original>
// kernel: fused_conv_net.1
$region0: #{fused_conv_net.1}
  #allocation0 [shape = 'u32[]', space=smem, size = 0x4, offset = 0x4, fixed_abs, tag = 'smem constant byte address 0x4 - core index']
  #allocation1 [shape = 'u32[144,128]{1,0:T(1,128)}', space=vmem, size = 0x12000, scoped, tag = 'internal scratch']
  #allocation2 [shape = 'f32[1,1]{1,0:T(1,128)S(1)}', space=vmem, size = 0x200, scoped, tag = 'scoped memory for fused_conv_net.1']
  %s0 = inlined_call_operand.vmem [shape: bf16[2,16,8,128], index: 0, kind: input, shape index: {}]
  %s1 = inlined_call_operand.vmem [shape: bf16[2,128,16], index: 1, kind: input, shape index: {}]
  %s2 = inlined_call_operand.vmem [shape: f32[1,16], index: 2, kind: input, shape index: {}]
  %s3 = inlined_call_operand.vmem [shape: bf16[2,32,8], index: 3, kind: input, shape index: {}]
  %s4 = inlined_call_operand.vmem [shape: f32[1,8], index: 4, kind: input, shape index: {}]
  %s5 = inlined_call_operand.vmem [shape: bf16[2,16,4], index: 5, kind: input, shape index: {}]
  %s6 = inlined_call_operand.vmem [shape: f32[1,4], index: 6, kind: input, shape index: {}]
  %s7 = inlined_call_operand.vmem [shape: bf16[2,8,1], index: 7, kind: input, shape index: {}]
  %s8 = inlined_call_operand.<no memory space> [shape: f32[1,1], index: 8, kind: input, shape index: {}]
  %s9 = inlined_call_operand.vmem [shape: f32[2,1,1], index: 9, kind: output, shape index: {}]
  %s10 = sld [smem:[#allocation0]]
  $region69: #{fused_conv_net.1} parent=0
    _
  %s12 = ssub.s32 1, %s10
  %s13 = scalar_select 0, %s12, %s10
  %v14 = vstv %s8
  %15 = vst [vmem:[#allocation2] sm:$0x1] %v14
  loop: start=0, step=1, limit=4
  $region2: #{fused_conv_net.1} parent=0 // loop_pre_header
    _
  $region3: #{fused_conv_net.1} parent=0 // loop_header
    %s17 = sphi 0, %s21
    %p18 = scmp.ge.s32.totalorder %s17, 4
    %s27 = sphi 0, %s29
    %s30 = sphi 0, %s27
    %s31 = sphi 0, %s30
    %s47 = sphi 0, %s31
    %s51 = sphi 0, %s51
    %s53 = sphi 0, %s51
    %s54 = sphi 0, %s53
    %s68 = sphi 0, %s54
    %s72 = sphi 0, %s72
    %s74 = sphi 0, %s72
    %s75 = sphi 0, %s74
    %s89 = sphi 0, %s75
    %s93 = sphi 0, %s93
    %s95 = sphi 0, %s93
    %s96 = sphi 0, %s95
    %s110 = sphi 0, %s96
    %s114 = sphi 0, %s114
    %s116 = sphi 0, %s114
    %s117 = sphi 0, %s116
    %s131 = sphi 0, %s117
    %s135 = sphi 0, %s135
    %s137 = sphi 0, %s135
    %s138 = sphi 0, %s137
    %s152 = sphi 0, %s138
    %s156 = sphi 0, %s156
    %s158 = sphi 0, %s156
    %s159 = sphi 0, %s158
    %s173 = sphi 0, %s159
    %s177 = sphi 0, %s177
    %s179 = sphi 0, %s177
    %s180 = sphi 0, %s179
    %s194 = sphi 0, %s180
    %s198 = sphi 0, %s198
    %s200 = sphi 0, %s198
    %s201 = sphi 0, %s200
    %s215 = sphi 0, %s201
    %s221 = sphi 0, %s223
    %s224 = sphi 0, %s221
    %s225 = sphi 0, %s224
    %s241 = sphi 0, %s225
  $region4: #{fused_conv_net.1} parent=0 // loop_header_branch
    %20 = sbr.rel (%p18) target = $region8
  $region5: #{fused_conv_net.1} parent=0 // loop_body
    %s22 = ssub.s32 %s17, 1
    %s23 = ssub.s32 %s17, 2
    %s24 = sadd.s32 %s17, 1
    %s25 = ssub.s32 %s17, %s24
    %p26 = scmp.eq.s32.totalorder %s25, 0
    %s28 = sadd.s32 %s27, 1
    %s29 = scalar_select %p26, %s27, %s28
    %p32 = pneg %p26
    %p33 = scmp.eq.s32.totalorder %s17, 1
    %p34 = por %p32, %p33
    %p35 = scmp.ne.s32.totalorder %s27, %s30
    %p36 = scmp.eq.s32.totalorder %s17, 0
    %p37 = por %p35, %p36
    %p38 = scmp.ne.s32.totalorder %s27, %s30
    %p39 = scmp.eq.s32.totalorder %s22, 1
    %p40 = por %p38, %p39
    %p41 = scmp.ne.s32.totalorder %s30, %s31
    %p42 = scmp.eq.s32.totalorder %s22, 0
    %p43 = por %p41, %p42
    %p44 = scmp.ne.s32.totalorder %s30, %s31
    %p45 = scmp.eq.s32.totalorder %s23, 1
    %p46 = por %p44, %p45
    %p48 = scmp.ne.s32.totalorder %s31, %s47
    %p49 = scmp.eq.s32.totalorder %s23, 0
    %p50 = por %p48, %p49
    %s52 = sadd.s32 %s51, 1
    %p55 = scmp.eq.s32.totalorder %s17, 1
    %p56 = scmp.ne.s32.totalorder %s51, %s53
    %p57 = scmp.eq.s32.totalorder %s17, 0
    %p58 = por %p56, %p57
    %p59 = scmp.ne.s32.totalorder %s51, %s53
    %p60 = scmp.eq.s32.totalorder %s22, 1
    %p61 = por %p59, %p60
    %p62 = scmp.ne.s32.totalorder %s53, %s54
    %p63 = scmp.eq.s32.totalorder %s22, 0
    %p64 = por %p62, %p63
    %p65 = scmp.ne.s32.totalorder %s53, %s54
    %p66 = scmp.eq.s32.totalorder %s23, 1
    %p67 = por %p65, %p66
    %p69 = scmp.ne.s32.totalorder %s54, %s68
    %p70 = scmp.eq.s32.totalorder %s23, 0
    %p71 = por %p69, %p70
    %s73 = sadd.s32 %s72, 1
    %p76 = scmp.eq.s32.totalorder %s17, 1
    %p77 = scmp.ne.s32.totalorder %s72, %s74
    %p78 = scmp.eq.s32.totalorder %s17, 0
    %p79 = por %p77, %p78
    %p80 = scmp.ne.s32.totalorder %s72, %s74
    %p81 = scmp.eq.s32.totalorder %s22, 1
    %p82 = por %p80, %p81
    %p83 = scmp.ne.s32.totalorder %s74, %s75
    %p84 = scmp.eq.s32.totalorder %s22, 0
    %p85 = por %p83, %p84
    %p86 = scmp.ne.s32.totalorder %s74, %s75
    %p87 = scmp.eq.s32.totalorder %s23, 1
    %p88 = por %p86, %p87
    %p90 = scmp.ne.s32.totalorder %s75, %s89
    %p91 = scmp.eq.s32.totalorder %s23, 0
    %p92 = por %p90, %p91
    %s94 = sadd.s32 %s93, 1
    %p97 = scmp.eq.s32.totalorder %s17, 1
    %p98 = scmp.ne.s32.totalorder %s93, %s95
    %p99 = scmp.eq.s32.totalorder %s17, 0
    %p100 = por %p98, %p99
    %p101 = scmp.ne.s32.totalorder %s93, %s95
    %p102 = scmp.eq.s32.totalorder %s22, 1
    %p103 = por %p101, %p102
    %p104 = scmp.ne.s32.totalorder %s95, %s96
    %p105 = scmp.eq.s32.totalorder %s22, 0
    %p106 = por %p104, %p105
    %p107 = scmp.ne.s32.totalorder %s95, %s96
    %p108 = scmp.eq.s32.totalorder %s23, 1
    %p109 = por %p107, %p108
    %p111 = scmp.ne.s32.totalorder %s96, %s110
    %p112 = scmp.eq.s32.totalorder %s23, 0
    %p113 = por %p111, %p112
    %s115 = sadd.s32 %s114, 1
    %p118 = scmp.eq.s32.totalorder %s17, 1
    %p119 = scmp.ne.s32.totalorder %s114, %s116
    %p120 = scmp.eq.s32.totalorder %s17, 0
    %p121 = por %p119, %p120
    %p122 = scmp.ne.s32.totalorder %s114, %s116
    %p123 = scmp.eq.s32.totalorder %s22, 1
    %p124 = por %p122, %p123
    %p125 = scmp.ne.s32.totalorder %s116, %s117
    %p126 = scmp.eq.s32.totalorder %s22, 0
    %p127 = por %p125, %p126
    %p128 = scmp.ne.s32.totalorder %s116, %s117
    %p129 = scmp.eq.s32.totalorder %s23, 1
    %p130 = por %p128, %p129
    %p132 = scmp.ne.s32.totalorder %s117, %s131
    %p133 = scmp.eq.s32.totalorder %s23, 0
    %p134 = por %p132, %p133
    %s136 = sadd.s32 %s135, 1
    %p139 = scmp.eq.s32.totalorder %s17, 1
    %p140 = scmp.ne.s32.totalorder %s135, %s137
    %p141 = scmp.eq.s32.totalorder %s17, 0
    %p142 = por %p140, %p141
    %p143 = scmp.ne.s32.totalorder %s135, %s137
    %p144 = scmp.eq.s32.totalorder %s22, 1
    %p145 = por %p143, %p144
    %p146 = scmp.ne.s32.totalorder %s137, %s138
    %p147 = scmp.eq.s32.totalorder %s22, 0
    %p148 = por %p146, %p147
    %p149 = scmp.ne.s32.totalorder %s137, %s138
    %p150 = scmp.eq.s32.totalorder %s23, 1
    %p151 = por %p149, %p150
    %p153 = scmp.ne.s32.totalorder %s138, %s152
    %p154 = scmp.eq.s32.totalorder %s23, 0
    %p155 = por %p153, %p154
    %s157 = sadd.s32 %s156, 1
    %p160 = scmp.eq.s32.totalorder %s17, 1
    %p161 = scmp.ne.s32.totalorder %s156, %s158
    %p162 = scmp.eq.s32.totalorder %s17, 0
    %p163 = por %p161, %p162
    %p164 = scmp.ne.s32.totalorder %s156, %s158
    %p165 = scmp.eq.s32.totalorder %s22, 1
    %p166 = por %p164, %p165
    %p167 = scmp.ne.s32.totalorder %s158, %s159
    %p168 = scmp.eq.s32.totalorder %s22, 0
    %p169 = por %p167, %p168
    %p170 = scmp.ne.s32.totalorder %s158, %s159
    %p171 = scmp.eq.s32.totalorder %s23, 1
    %p172 = por %p170, %p171
    %p174 = scmp.ne.s32.totalorder %s159, %s173
    %p175 = scmp.eq.s32.totalorder %s23, 0
    %p176 = por %p174, %p175
    %s178 = sadd.s32 %s177, 1
    %p181 = scmp.eq.s32.totalorder %s17, 1
    %p182 = scmp.ne.s32.totalorder %s177, %s179
    %p183 = scmp.eq.s32.totalorder %s17, 0
    %p184 = por %p182, %p183
    %p185 = scmp.ne.s32.totalorder %s177, %s179
    %p186 = scmp.eq.s32.totalorder %s22, 1
    %p187 = por %p185, %p186
    %p188 = scmp.ne.s32.totalorder %s179, %s180
    %p189 = scmp.eq.s32.totalorder %s22, 0
    %p190 = por %p188, %p189
    %p191 = scmp.ne.s32.totalorder %s179, %s180
    %p192 = scmp.eq.s32.totalorder %s23, 1
    %p193 = por %p191, %p192
    %p195 = scmp.ne.s32.totalorder %s180, %s194
    %p196 = scmp.eq.s32.totalorder %s23, 0
    %p197 = por %p195, %p196
    %s199 = sadd.s32 %s198, 1
    %p202 = scmp.eq.s32.totalorder %s17, 1
    %p203 = scmp.ne.s32.totalorder %s198, %s200
    %p204 = scmp.eq.s32.totalorder %s17, 0
    %p205 = por %p203, %p204
    %p206 = scmp.ne.s32.totalorder %s198, %s200
    %p207 = scmp.eq.s32.totalorder %s22, 1
    %p208 = por %p206, %p207
    %p209 = scmp.ne.s32.totalorder %s200, %s201
    %p210 = scmp.eq.s32.totalorder %s22, 0
    %p211 = por %p209, %p210
    %p212 = scmp.ne.s32.totalorder %s200, %s201
    %p213 = scmp.eq.s32.totalorder %s23, 1
    %p214 = por %p212, %p213
    %p216 = scmp.ne.s32.totalorder %s201, %s215
    %p217 = scmp.eq.s32.totalorder %s23, 0
    %p218 = por %p216, %p217
    %s219 = ssub.s32 %s17, %s24
    %p220 = scmp.eq.s32.totalorder %s219, 0
    %s222 = sadd.s32 %s221, 1
    %s223 = scalar_select %p220, %s221, %s222
    %p226 = pneg %p220
    %p227 = scmp.eq.s32.totalorder %s17, 1
    %p228 = por %p226, %p227
    %p229 = scmp.ne.s32.totalorder %s221, %s224
    %p230 = scmp.eq.s32.totalorder %s17, 0
    %p231 = por %p229, %p230
    %p232 = scmp.ne.s32.totalorder %s221, %s224
    %p233 = scmp.eq.s32.totalorder %s22, 1
    %p234 = por %p232, %p233
    %p235 = scmp.ne.s32.totalorder %s224, %s225
    %p236 = scmp.eq.s32.totalorder %s22, 0
    %p237 = por %p235, %p236
    %p238 = scmp.ne.s32.totalorder %s224, %s225
    %p239 = scmp.eq.s32.totalorder %s23, 1
    %p240 = por %p238, %p239
    %p242 = scmp.ne.s32.totalorder %s225, %s241
    %p243 = scmp.eq.s32.totalorder %s23, 0
    %p244 = por %p242, %p243
    %p245 = scmp.le.s32.totalorder 1, %s17
    %p246 = scmp.lt.s32.totalorder %s17, 3
    %p247 = pnand %p245, %p246
    %p248 = pneg %p247
    // Predicated region
    $region9: #{fused_conv_net.1} parent=5 // pred_check
      _
    $region10: #{fused_conv_net.1} parent=5 // pred_check_branch
      %250 = sbr.rel (%p247) target = $region12
    $region11: #{fused_conv_net.1} parent=5 // pred_region
      %s251 = ssub.s32 %s17, 1
      // Predicated region
      $region13: #{fused_conv_net.1} parent=11 // pred_check
        %p252 = pneg %p64
      $region14: #{fused_conv_net.1} parent=11 // pred_check_branch
        %254 = sbr.rel (%p252) target = $region16
      $region15: #{fused_conv_net.1} parent=11 // pred_region
        _
      $region16: #{fused_conv_net.1} parent=11 // pred_fallthru
        _
      // Predicated region
      $region17: #{fused_conv_net.1} parent=11 // pred_check
        %p255 = pneg %p85
      $region18: #{fused_conv_net.1} parent=11 // pred_check_branch
        %257 = sbr.rel (%p255) target = $region20
      $region19: #{fused_conv_net.1} parent=11 // pred_region
        _
      $region20: #{fused_conv_net.1} parent=11 // pred_fallthru
        _
      // Predicated region
      $region21: #{fused_conv_net.1} parent=11 // pred_check
        %p258 = pneg %p106
      $region22: #{fused_conv_net.1} parent=11 // pred_check_branch
        %260 = sbr.rel (%p258) target = $region24
      $region23: #{fused_conv_net.1} parent=11 // pred_region
        _
      $region24: #{fused_conv_net.1} parent=11 // pred_fallthru
        _
      // Predicated region
      $region25: #{fused_conv_net.1} parent=11 // pred_check
        %p261 = pneg %p127
      $region26: #{fused_conv_net.1} parent=11 // pred_check_branch
        %263 = sbr.rel (%p261) target = $region28
      $region27: #{fused_conv_net.1} parent=11 // pred_region
        _
      $region28: #{fused_conv_net.1} parent=11 // pred_fallthru
        _
      // Predicated region
      $region29: #{fused_conv_net.1} parent=11 // pred_check
        %p264 = pneg %p148
      $region30: #{fused_conv_net.1} parent=11 // pred_check_branch
        %266 = sbr.rel (%p264) target = $region32
      $region31: #{fused_conv_net.1} parent=11 // pred_region
        _
      $region32: #{fused_conv_net.1} parent=11 // pred_fallthru
        _
      // Predicated region
      $region33: #{fused_conv_net.1} parent=11 // pred_check
        %p267 = pneg %p169
      $region34: #{fused_conv_net.1} parent=11 // pred_check_branch
        %269 = sbr.rel (%p267) target = $region36
      $region35: #{fused_conv_net.1} parent=11 // pred_region
        _
      $region36: #{fused_conv_net.1} parent=11 // pred_fallthru
        _
      // Predicated region
      $region37: #{fused_conv_net.1} parent=11 // pred_check
        %p270 = pneg %p190
      $region38: #{fused_conv_net.1} parent=11 // pred_check_branch
        %272 = sbr.rel (%p270) target = $region40
      $region39: #{fused_conv_net.1} parent=11 // pred_region
        _
      $region40: #{fused_conv_net.1} parent=11 // pred_fallthru
        _
      // Predicated region
      $region41: #{fused_conv_net.1} parent=11 // pred_check
        %p273 = pneg %p211
      $region42: #{fused_conv_net.1} parent=11 // pred_check_branch
        %275 = sbr.rel (%p273) target = $region44
      $region43: #{fused_conv_net.1} parent=11 // pred_region
        _
      $region44: #{fused_conv_net.1} parent=11 // pred_fallthru
        _
    $region12: #{fused_conv_net.1} parent=5 // pred_fallthru
      _
    %p276 = scmp.lt.s32.totalorder %s17, 2
    // Predicated region
    $region45: #{fused_conv_net.1} parent=5 // pred_check
      %p277 = pneg %p276
    $region46: #{fused_conv_net.1} parent=5 // pred_check_branch
      %279 = sbr.rel (%p277) target = $region48
    $region47: #{fused_conv_net.1} parent=5 // pred_region
      // Predicated region
      $region49: #{fused_conv_net.1} parent=47 // pred_check
        %p280 = pneg %p37
      $region50: #{fused_conv_net.1} parent=47 // pred_check_branch
        %282 = sbr.rel (%p280) target = $region52
      $region51: #{fused_conv_net.1} parent=47 // pred_region
        %p283 = scmp.lt.s32.totalorder %s17, 1
        %s284 = scalar_select %p283, %s17, 1
        %s285 = smul.addr %s284, 16
        %s286 = smul.addr %s285, 4
        %s287 = scalar_lea.vmem %s0, %s286
      $region52: #{fused_conv_net.1} parent=47 // pred_fallthru
        _
    $region48: #{fused_conv_net.1} parent=5 // pred_fallthru
      _
    %p288 = scmp.le.s32.totalorder 1, %s17
    %p289 = scmp.lt.s32.totalorder %s17, 3
    %p290 = pnand %p288, %p289
    %p291 = pneg %p290
    // Predicated region
    $region53: #{fused_conv_net.1} parent=5 // pred_check
      _
    $region54: #{fused_conv_net.1} parent=5 // pred_check_branch
      %293 = sbr.rel (%p290) target = $region56
    $region55: #{fused_conv_net.1} parent=5 // pred_region
      %s294 = ssub.s32 %s17, 1
      %p295 = scmp.lt.s32.totalorder %s22, 1
      %s296 = scalar_select %p295, %s22, 1
      %s297 = smul.addr %s296, 16
      %s298 = smul.addr %s297, 4
      %s299 = scalar_lea.vmem %s0, %s298
      %p300 = pneg %p43
      %p301 = pneg %p40
      %p302 = pneg %p64
      %p303 = pneg %p61
      %p304 = pneg %p85
      %p305 = pneg %p82
      %p306 = pneg %p106
      %p307 = pneg %p103
      %p308 = pneg %p127
      %p309 = pneg %p124
      %p310 = pneg %p148
      %p311 = pneg %p145
      %p312 = pneg %p169
      %p313 = pneg %p166
      %p314 = pneg %p190
      %p315 = pneg %p187
      %p316 = pneg %p211
      %p317 = pneg %p208
      %p318 = pneg %p237
      %p319 = pneg %p234
      %p320 = scmp.lt.s32.totalorder %s22, 1
      %s321 = scalar_select %p320, %s22, 1
      %s322 = scalar_lea.vmem %s9, %s321
      %p323 = scmp.lt.s32.totalorder %s22, 1
      %s324 = scalar_select %p323, %s22, 1
      %s325 = smul.addr %s324, 16
      %s326 = smul.addr %s325, 4
      %s327 = scalar_lea.vmem %s0, %s326
      %p328 = scmp.lt.s32.totalorder %s22, 1
      %s329 = scalar_select %p328, %s22, 1
      %s330 = scalar_lea.vmem %s9, %s329
      %v332 = vld [vmem:[%s327] sm:$0xf]
      %v333 = vld [vmem:[%s327 + $0x4] sm:$0xf]
      %v334 = vld [vmem:[%s327 + $0x8] sm:$0xf]
      %v335 = vld [vmem:[%s327 + $0xc] sm:$0xf]
      %v336 = vld [vmem:[%s327 + $0x10] sm:$0xf]
      %v337 = vld [vmem:[%s327 + $0x14] sm:$0xf]
      %v338 = vld [vmem:[%s327 + $0x18] sm:$0xf]
      %v339 = vld [vmem:[%s327 + $0x1c] sm:$0xf]
      %v340 = vld [vmem:[%s327 + $0x20] sm:$0xf]
      %v341 = vld [vmem:[%s327 + $0x24] sm:$0xf]
      %v342 = vld [vmem:[%s327 + $0x28] sm:$0xf]
      %v343 = vld [vmem:[%s327 + $0x2c] sm:$0xf]
      %v344 = vld [vmem:[%s327 + $0x30] sm:$0xf]
      %v345 = vld [vmem:[%s327 + $0x34] sm:$0xf]
      %v346 = vld [vmem:[%s327 + $0x38] sm:$0xf]
      %v347 = vld [vmem:[%s327 + $0x3c] sm:$0xf]
      %v348 = vld [vmem:[%s1] sm:$0xf]
      %v349 = vld [vmem:[%s1 + $0x4] sm:$0xf]
      %v350 = vld [vmem:[%s1 + $0x8] sm:$0xf]
      %v351 = vld [vmem:[%s1 + $0xc] sm:$0xf]
      %v352 = vld [vmem:[%s1 + $0x10] sm:$0xf]
      %v353 = vld [vmem:[%s1 + $0x14] sm:$0xf]
      %v354 = vld [vmem:[%s1 + $0x18] sm:$0xf]
      %v355 = vld [vmem:[%s1 + $0x1c] sm:$0xf]
      %v356 = vld [vmem:[%s1 + $0x20] sm:$0xf]
      %v357 = vld [vmem:[%s1 + $0x24] sm:$0xf]
      %v358 = vld [vmem:[%s1 + $0x28] sm:$0xf]
      %v359 = vld [vmem:[%s1 + $0x2c] sm:$0xf]
      %v360 = vld [vmem:[%s1 + $0x30] sm:$0xf]
      %v361 = vld [vmem:[%s1 + $0x34] sm:$0xf]
      %v362 = vld [vmem:[%s1 + $0x38] sm:$0xf]
      %v363 = vld [vmem:[%s1 + $0x3c] sm:$0xf]
      %s364 = scalar_lea.vmem %s1, 64
      %v365 = vld [vmem:[%s364] sm:$0xf]
      %v366 = vld [vmem:[%s364 + $0x4] sm:$0xf]
      %v367 = vld [vmem:[%s364 + $0x8] sm:$0xf]
      %v368 = vld [vmem:[%s364 + $0xc] sm:$0xf]
      %v369 = vld [vmem:[%s364 + $0x10] sm:$0xf]
      %v370 = vld [vmem:[%s364 + $0x14] sm:$0xf]
      %v371 = vld [vmem:[%s364 + $0x18] sm:$0xf]
      %v372 = vld [vmem:[%s364 + $0x1c] sm:$0xf]
      %v373 = vld [vmem:[%s364 + $0x20] sm:$0xf]
      %v374 = vld [vmem:[%s364 + $0x24] sm:$0xf]
      %v375 = vld [vmem:[%s364 + $0x28] sm:$0xf]
      %v376 = vld [vmem:[%s364 + $0x2c] sm:$0xf]
      %v377 = vld [vmem:[%s364 + $0x30] sm:$0xf]
      %v378 = vld [vmem:[%s364 + $0x34] sm:$0xf]
      %v379 = vld [vmem:[%s364 + $0x38] sm:$0xf]
      %v380 = vld [vmem:[%s364 + $0x3c] sm:$0xf]
      %v389 = vunpack.c.l.b16 %v333
      %v390 = vunpack.c.l.b16 %v335
      %v391 = vunpack.c.l.b16 %v337
      %v392 = vunpack.c.l.b16 %v339
      %v393 = vunpack.c.l.b16 %v341
      %v394 = vunpack.c.l.b16 %v343
      %v395 = vunpack.c.l.b16 %v345
      %v396 = vunpack.c.l.b16 %v347
      %v397 = vpack.c.b16 %v390, %v389
      %v398 = vpack.c.b16 %v392, %v391
      %v399 = vpack.c.b16 %v394, %v393
      %v400 = vpack.c.b16 %v396, %v395
      %v421 = vunpack.c.l.b16 %v365
      %v422 = vunpack.c.l.b16 %v366
      %v423 = vunpack.c.l.b16 %v367
      %v424 = vunpack.c.l.b16 %v368
      %v425 = vunpack.c.l.b16 %v369
      %v426 = vunpack.c.l.b16 %v370
      %v427 = vunpack.c.l.b16 %v371
      %v428 = vunpack.c.l.b16 %v372
      %v429 = vunpack.c.l.b16 %v373
      %v430 = vunpack.c.l.b16 %v374
      %v431 = vunpack.c.l.b16 %v375
      %v432 = vunpack.c.l.b16 %v376
      %v433 = vunpack.c.l.b16 %v377
      %v434 = vunpack.c.l.b16 %v378
      %v435 = vunpack.c.l.b16 %v379
      %v436 = vunpack.c.l.b16 %v380
      %v437 = vpack.c.b16 %v422, %v421
      %v438 = vpack.c.b16 %v424, %v423
      %v439 = vpack.c.b16 %v426, %v425
      %v440 = vpack.c.b16 %v428, %v427
      %v441 = vpack.c.b16 %v430, %v429
      %v442 = vpack.c.b16 %v432, %v431
      %v443 = vpack.c.b16 %v434, %v433
      %v444 = vpack.c.b16 %v436, %v435
      %453 = vmatprep.subr.bf16.mxu0 0
      %454 = vmatpush1.bf16.msra.mxu0 %v444
      %455 = vmatprep.subr.bf16.mxu0 0
      %456 = vmatpush1.bf16.msra.mxu0 %v443
      %457 = vmatprep.subr.bf16.mxu0 0
      %458 = vmatpush1.bf16.msra.mxu0 %v442
      %459 = vmatprep.subr.bf16.mxu0 0
      %460 = vmatpush1.bf16.msra.mxu0 %v441
      %461 = vmatprep.subr.bf16.mxu0 0
      %462 = vmatpush1.bf16.msra.mxu0 %v440
      %463 = vmatprep.subr.bf16.mxu0 0
      %464 = vmatpush1.bf16.msra.mxu0 %v439
      %465 = vmatprep.subr.bf16.mxu0 0
      %466 = vmatpush1.bf16.msra.mxu0 %v438
      %467 = vmatprep.subr.bf16.mxu0 0
      %468 = vmatpush1.bf16.msra.mxu0 %v437
      %469 = vmatprep.subr.bf16.mxu0 0
      %470 = vmatpush2.bf16.msra.mxu0 0
      %471 = vmatprep.subr.bf16.mxu0 0
      %472 = vmatpush2.bf16.msra.mxu0 0
      %473 = vmatprep.subr.bf16.mxu0 0
      %474 = vmatpush2.bf16.msra.mxu0 0
      %475 = vmatprep.subr.bf16.mxu0 0
      %476 = vmatpush2.bf16.msra.mxu0 0
      %477 = vmatprep.subr.bf16.mxu0 0
      %478 = vmatpush2.bf16.msra.mxu0 0
      %479 = vmatprep.subr.bf16.mxu0 0
      %480 = vmatpush2.bf16.msra.mxu0 0
      %481 = vmatprep.subr.bf16.mxu0 0
      %482 = vmatpush2.bf16.msra.mxu0 0
      %483 = vmatprep.subr.bf16.mxu0 0
      %484 = vmatpush2.bf16.msra.mxu0 0
      %485 = vmatprep.mubr.bf16.mxu0 0
      %486 = vmatmul.mubr.bf16.gmra.mxu0 %v397
      %v487 = vpop.f32.mrf.mxu0
      %v488 = vadd.f32 0.0, %v487
      %v489 = vpop.f32.mrf.mxu0
      %v490 = vpop.f32.mrf.mxu0
      %v491 = vadd.f32 0.0, %v490
      %v492 = vpop.f32.mrf.mxu0
      %493 = vmatprep.mubr.bf16.mxu0 0
      %494 = vmatmul.mubr.bf16.gmra.mxu0 %v398
      %v495 = vpop.f32.mrf.mxu0
      %v496 = vadd.f32 0.0, %v495
      %v497 = vpop.f32.mrf.mxu0
      %v498 = vpop.f32.mrf.mxu0
      %v499 = vadd.f32 0.0, %v498
      %v500 = vpop.f32.mrf.mxu0
      %501 = vmatprep.mubr.bf16.mxu0 0
      %502 = vmatmul.mubr.bf16.gmra.mxu0 %v399
      %v503 = vpop.f32.mrf.mxu0
      %v504 = vadd.f32 0.0, %v503
      %v505 = vpop.f32.mrf.mxu0
      %v506 = vpop.f32.mrf.mxu0
      %v507 = vadd.f32 0.0, %v506
      %v508 = vpop.f32.mrf.mxu0
      %509 = vmatprep.mubr.bf16.mxu0 0
      %510 = vmatmul.mubr.bf16.gmra.mxu0 %v400
      %v511 = vpop.f32.mrf.mxu0
      %v512 = vadd.f32 0.0, %v511
      %v513 = vpop.f32.mrf.mxu0
      %v514 = vpop.f32.mrf.mxu0
      %v515 = vadd.f32 0.0, %v514
      %v516 = vpop.f32.mrf.mxu0
      %517 = vdwg.mxu0
      %v526 = vunpack.c.l.b16 %v332
      %v527 = vunpack.c.l.b16 %v334
      %v528 = vunpack.c.l.b16 %v336
      %v529 = vunpack.c.l.b16 %v338
      %v530 = vunpack.c.l.b16 %v340
      %v531 = vunpack.c.l.b16 %v342
      %v532 = vunpack.c.l.b16 %v344
      %v533 = vunpack.c.l.b16 %v346
      %v534 = vpack.c.b16 %v527, %v526
      %v535 = vpack.c.b16 %v529, %v528
      %v536 = vpack.c.b16 %v531, %v530
      %v537 = vpack.c.b16 %v533, %v532
      %v558 = vunpack.c.l.b16 %v348
      %v559 = vunpack.c.l.b16 %v349
      %v560 = vunpack.c.l.b16 %v350
      %v561 = vunpack.c.l.b16 %v351
      %v562 = vunpack.c.l.b16 %v352
      %v563 = vunpack.c.l.b16 %v353
      %v564 = vunpack.c.l.b16 %v354
      %v565 = vunpack.c.l.b16 %v355
      %v566 = vunpack.c.l.b16 %v356
      %v567 = vunpack.c.l.b16 %v357
      %v568 = vunpack.c.l.b16 %v358
      %v569 = vunpack.c.l.b16 %v359
      %v570 = vunpack.c.l.b16 %v360
      %v571 = vunpack.c.l.b16 %v361
      %v572 = vunpack.c.l.b16 %v362
      %v573 = vunpack.c.l.b16 %v363
      %v574 = vpack.c.b16 %v559, %v558
      %v575 = vpack.c.b16 %v561, %v560
      %v576 = vpack.c.b16 %v563, %v562
      %v577 = vpack.c.b16 %v565, %v564
      %v578 = vpack.c.b16 %v567, %v566
      %v579 = vpack.c.b16 %v569, %v568
      %v580 = vpack.c.b16 %v571, %v570
      %v581 = vpack.c.b16 %v573, %v572
      %590 = vmatprep.subr.bf16.mxu0 0
      %591 = vmatpush1.bf16.msra.mxu0 %v581
      %592 = vmatprep.subr.bf16.mxu0 0
      %593 = vmatpush1.bf16.msra.mxu0 %v580
      %594 = vmatprep.subr.bf16.mxu0 0
      %595 = vmatpush1.bf16.msra.mxu0 %v579
      %596 = vmatprep.subr.bf16.mxu0 0
      %597 = vmatpush1.bf16.msra.mxu0 %v578
      %598 = vmatprep.subr.bf16.mxu0 0
      %599 = vmatpush1.bf16.msra.mxu0 %v577
      %600 = vmatprep.subr.bf16.mxu0 0
      %601 = vmatpush1.bf16.msra.mxu0 %v576
      %602 = vmatprep.subr.bf16.mxu0 0
      %603 = vmatpush1.bf16.msra.mxu0 %v575
      %604 = vmatprep.subr.bf16.mxu0 0
      %605 = vmatpush1.bf16.msra.mxu0 %v574
      %606 = vmatprep.subr.bf16.mxu0 0
      %607 = vmatpush2.bf16.msra.mxu0 0
      %608 = vmatprep.subr.bf16.mxu0 0
      %609 = vmatpush2.bf16.msra.mxu0 0
      %610 = vmatprep.subr.bf16.mxu0 0
      %611 = vmatpush2.bf16.msra.mxu0 0
      %612 = vmatprep.subr.bf16.mxu0 0
      %613 = vmatpush2.bf16.msra.mxu0 0
      %614 = vmatprep.subr.bf16.mxu0 0
      %615 = vmatpush2.bf16.msra.mxu0 0
      %616 = vmatprep.subr.bf16.mxu0 0
      %617 = vmatpush2.bf16.msra.mxu0 0
      %618 = vmatprep.subr.bf16.mxu0 0
      %619 = vmatpush2.bf16.msra.mxu0 0
      %620 = vmatprep.subr.bf16.mxu0 0
      %621 = vmatpush2.bf16.msra.mxu0 0
      %622 = vmatprep.mubr.bf16.mxu0 0
      %623 = vmatmul.mubr.bf16.gmra.mxu0 %v534
      %v624 = vpop.f32.mrf.mxu0
      %v625 = vadd.f32 %v488, %v624
      %v626 = vpop.f32.mrf.mxu0
      %v627 = vpop.f32.mrf.mxu0
      %v628 = vadd.f32 %v491, %v627
      %v629 = vpop.f32.mrf.mxu0
      %630 = vmatprep.mubr.bf16.mxu0 0
      %631 = vmatmul.mubr.bf16.gmra.mxu0 %v535
      %v632 = vpop.f32.mrf.mxu0
      %v633 = vadd.f32 %v496, %v632
      %v634 = vpop.f32.mrf.mxu0
      %v635 = vpop.f32.mrf.mxu0
      %v636 = vadd.f32 %v499, %v635
      %v637 = vpop.f32.mrf.mxu0
      %638 = vmatprep.mubr.bf16.mxu0 0
      %639 = vmatmul.mubr.bf16.gmra.mxu0 %v536
      %v640 = vpop.f32.mrf.mxu0
      %v641 = vadd.f32 %v504, %v640
      %v642 = vpop.f32.mrf.mxu0
      %v643 = vpop.f32.mrf.mxu0
      %v644 = vadd.f32 %v507, %v643
      %v645 = vpop.f32.mrf.mxu0
      %646 = vmatprep.mubr.bf16.mxu0 0
      %647 = vmatmul.mubr.bf16.gmra.mxu0 %v537
      %v648 = vpop.f32.mrf.mxu0
      %v649 = vadd.f32 %v512, %v648
      %v650 = vpop.f32.mrf.mxu0
      %v651 = vpop.f32.mrf.mxu0
      %v652 = vadd.f32 %v515, %v651
      %v653 = vpop.f32.mrf.mxu0
      %654 = vdwg.mxu0
      %v655 = vld [vmem:[%s2] sm:$0x1]
      %v657 = vlaneseq
      %v658 = vshrl.u32 %v657, 7
      %v659 = vsub.s32 0, %v658
      %v660 = vrot.slane %v655, %v659
      %v662 = vadd.f32 %v625, %v660
      %v663 = vadd.f32 %v628, %v660
      %v664 = vadd.f32 %v633, %v660
      %v665 = vadd.f32 %v636, %v660
      %v666 = vadd.f32 %v641, %v660
      %v667 = vadd.f32 %v644, %v660
      %v668 = vadd.f32 %v649, %v660
      %v669 = vadd.f32 %v652, %v660
      %v670 = vsub.f32 0.0, %v662
      %v671 = vsub.f32 0.0, %v663
      %v672 = vsub.f32 0.0, %v664
      %v673 = vsub.f32 0.0, %v665
      %v674 = vsub.f32 0.0, %v666
      %v675 = vsub.f32 0.0, %v667
      %v676 = vsub.f32 0.0, %v668
      %v677 = vsub.f32 0.0, %v669
      %v678 = vmul.f32 %v670, 1.442695
      %v679 = vpow.pop %v678
      %v680 = vmul.f32 %v671, 1.442695
      %v681 = vpow.pop %v680
      %v682 = vmul.f32 %v672, 1.442695
      %v683 = vpow.pop %v682
      %v684 = vmul.f32 %v673, 1.442695
      %v685 = vpow.pop %v684
      %v686 = vmul.f32 %v674, 1.442695
      %v687 = vpow.pop %v686
      %v688 = vmul.f32 %v675, 1.442695
      %v689 = vpow.pop %v688
      %v690 = vmul.f32 %v676, 1.442695
      %v691 = vpow.pop %v690
      %v692 = vmul.f32 %v677, 1.442695
      %v693 = vpow.pop %v692
      %v694 = vadd.f32 %v679, 1.0
      %v695 = vadd.f32 %v681, 1.0
      %v696 = vadd.f32 %v683, 1.0
      %v697 = vadd.f32 %v685, 1.0
      %v698 = vadd.f32 %v687, 1.0
      %v699 = vadd.f32 %v689, 1.0
      %v700 = vadd.f32 %v691, 1.0
      %v701 = vadd.f32 %v693, 1.0
      %v702 = vrcp.pop %v694
      %v703 = vmul.f32 1.0, %v702
      %v704 = vrcp.pop %v695
      %v705 = vmul.f32 1.0, %v704
      %v706 = vrcp.pop %v696
      %v707 = vmul.f32 1.0, %v706
      %v708 = vrcp.pop %v697
      %v709 = vmul.f32 1.0, %v708
      %v710 = vrcp.pop %v698
      %v711 = vmul.f32 1.0, %v710
      %v712 = vrcp.pop %v699
      %v713 = vmul.f32 1.0, %v712
      %v714 = vrcp.pop %v700
      %v715 = vmul.f32 1.0, %v714
      %v716 = vrcp.pop %v701
      %v717 = vmul.f32 1.0, %v716
      %v726 = vcombine.high %v703, %v703
      %v728 = vunpack.c.l.s4 1983009808
      %v729 = vunpack.c.0.s8 %v728
      %v730 = vlaneseq
      %v731 = vshrl.u32 %v730, 7
      %v732 = vsub.s32 %v729, %v731
      %v733 = vrot.slane %v703, %v732
      %v735 = vunpack.c.l.s4 1983009808
      %v736 = vunpack.c.0.s8 %v735
      %v737 = vlaneseq
      %v738 = vshrl.u32 %v737, 7
      %v739 = vsub.s32 %v736, %v738
      %v740 = vrot.slane %v726, %v739
      %v741 = vcombine.high %v733, %v733
      %v742 = vcombine.high %v740, %v740
      %v743 = vcombine.high %v705, %v705
      %v745 = vunpack.c.l.s4 1983009808
      %v746 = vunpack.c.0.s8 %v745
      %v747 = vlaneseq
      %v748 = vshrl.u32 %v747, 7
      %v749 = vsub.s32 %v746, %v748
      %v750 = vrot.slane %v705, %v749
      %v752 = vunpack.c.l.s4 1983009808
      %v753 = vunpack.c.0.s8 %v752
      %v754 = vlaneseq
      %v755 = vshrl.u32 %v754, 7
      %v756 = vsub.s32 %v753, %v755
      %v757 = vrot.slane %v743, %v756
      %v758 = vcombine.high %v750, %v750
      %v759 = vcombine.high %v757, %v757
      %v760 = vcombine.high %v707, %v707
      %v762 = vunpack.c.l.s4 1983009808
      %v763 = vunpack.c.0.s8 %v762
      %v764 = vlaneseq
      %v765 = vshrl.u32 %v764, 7
      %v766 = vsub.s32 %v763, %v765
      %v767 = vrot.slane %v707, %v766
      %v769 = vunpack.c.l.s4 1983009808
      %v770 = vunpack.c.0.s8 %v769
      %v771 = vlaneseq
      %v772 = vshrl.u32 %v771, 7
      %v773 = vsub.s32 %v770, %v772
      %v774 = vrot.slane %v760, %v773
      %v775 = vcombine.high %v767, %v767
      %v776 = vcombine.high %v774, %v774
      %v777 = vcombine.high %v709, %v709
      %v779 = vunpack.c.l.s4 1983009808
      %v780 = vunpack.c.0.s8 %v779
      %v781 = vlaneseq
      %v782 = vshrl.u32 %v781, 7
      %v783 = vsub.s32 %v780, %v782
      %v784 = vrot.slane %v709, %v783
      %v786 = vunpack.c.l.s4 1983009808
      %v787 = vunpack.c.0.s8 %v786
      %v788 = vlaneseq
      %v789 = vshrl.u32 %v788, 7
      %v790 = vsub.s32 %v787, %v789
      %v791 = vrot.slane %v777, %v790
      %v792 = vcombine.high %v784, %v784
      %v793 = vcombine.high %v791, %v791
      %v794 = vcombine.high %v711, %v711
      %v796 = vunpack.c.l.s4 1983009808
      %v797 = vunpack.c.0.s8 %v796
      %v798 = vlaneseq
      %v799 = vshrl.u32 %v798, 7
      %v800 = vsub.s32 %v797, %v799
      %v801 = vrot.slane %v711, %v800
      %v803 = vunpack.c.l.s4 1983009808
      %v804 = vunpack.c.0.s8 %v803
      %v805 = vlaneseq
      %v806 = vshrl.u32 %v805, 7
      %v807 = vsub.s32 %v804, %v806
      %v808 = vrot.slane %v794, %v807
      %v809 = vcombine.high %v801, %v801
      %v810 = vcombine.high %v808, %v808
      %v811 = vcombine.high %v713, %v713
      %v813 = vunpack.c.l.s4 1983009808
      %v814 = vunpack.c.0.s8 %v813
      %v815 = vlaneseq
      %v816 = vshrl.u32 %v815, 7
      %v817 = vsub.s32 %v814, %v816
      %v818 = vrot.slane %v713, %v817
      %v820 = vunpack.c.l.s4 1983009808
      %v821 = vunpack.c.0.s8 %v820
      %v822 = vlaneseq
      %v823 = vshrl.u32 %v822, 7
      %v824 = vsub.s32 %v821, %v823
      %v825 = vrot.slane %v811, %v824
      %v826 = vcombine.high %v818, %v818
      %v827 = vcombine.high %v825, %v825
      %v828 = vcombine.high %v715, %v715
      %v830 = vunpack.c.l.s4 1983009808
      %v831 = vunpack.c.0.s8 %v830
      %v832 = vlaneseq
      %v833 = vshrl.u32 %v832, 7
      %v834 = vsub.s32 %v831, %v833
      %v835 = vrot.slane %v715, %v834
      %v837 = vunpack.c.l.s4 1983009808
      %v838 = vunpack.c.0.s8 %v837
      %v839 = vlaneseq
      %v840 = vshrl.u32 %v839, 7
      %v841 = vsub.s32 %v838, %v840
      %v842 = vrot.slane %v828, %v841
      %v843 = vcombine.high %v835, %v835
      %v844 = vcombine.high %v842, %v842
      %v845 = vcombine.high %v717, %v717
      %v847 = vunpack.c.l.s4 1983009808
      %v848 = vunpack.c.0.s8 %v847
      %v849 = vlaneseq
      %v850 = vshrl.u32 %v849, 7
      %v851 = vsub.s32 %v848, %v850
      %v852 = vrot.slane %v717, %v851
      %v854 = vunpack.c.l.s4 1983009808
      %v855 = vunpack.c.0.s8 %v854
      %v856 = vlaneseq
      %v857 = vshrl.u32 %v856, 7
      %v858 = vsub.s32 %v855, %v857
      %v859 = vrot.slane %v845, %v858
      %v860 = vcombine.high %v852, %v852
      %v861 = vcombine.high %v859, %v859
      %v862 = vlaneseq
      %v863 = vshrl.u32 %v862, 7
      %v864 = vsub.s32 0, %v863
      %v865 = vrot.slane %v733, %v864
      %v866 = vlaneseq
      %v867 = vshrl.u32 %v866, 7
      %v868 = vsub.s32 0, %v867
      %v869 = vrot.slane %v741, %v868
      %v870 = vlaneseq
      %v871 = vshrl.u32 %v870, 7
      %v872 = vsub.s32 0, %v871
      %v873 = vrot.slane %v740, %v872
      %v874 = vlaneseq
      %v875 = vshrl.u32 %v874, 7
      %v876 = vsub.s32 0, %v875
      %v877 = vrot.slane %v742, %v876
      %v878 = vlaneseq
      %v879 = vshrl.u32 %v878, 7
      %v880 = vsub.s32 0, %v879
      %v881 = vrot.slane %v750, %v880
      %v882 = vlaneseq
      %v883 = vshrl.u32 %v882, 7
      %v884 = vsub.s32 0, %v883
      %v885 = vrot.slane %v758, %v884
      %v886 = vlaneseq
      %v887 = vshrl.u32 %v886, 7
      %v888 = vsub.s32 0, %v887
      %v889 = vrot.slane %v757, %v888
      %v890 = vlaneseq
      %v891 = vshrl.u32 %v890, 7
      %v892 = vsub.s32 0, %v891
      %v893 = vrot.slane %v759, %v892
      %v894 = vlaneseq
      %v895 = vshrl.u32 %v894, 7
      %v896 = vsub.s32 0, %v895
      %v897 = vrot.slane %v767, %v896
      %v898 = vlaneseq
      %v899 = vshrl.u32 %v898, 7
      %v900 = vsub.s32 0, %v899
      %v901 = vrot.slane %v775, %v900
      %v902 = vlaneseq
      %v903 = vshrl.u32 %v902, 7
      %v904 = vsub.s32 0, %v903
      %v905 = vrot.slane %v774, %v904
      %v906 = vlaneseq
      %v907 = vshrl.u32 %v906, 7
      %v908 = vsub.s32 0, %v907
      %v909 = vrot.slane %v776, %v908
      %v910 = vlaneseq
      %v911 = vshrl.u32 %v910, 7
      %v912 = vsub.s32 0, %v911
      %v913 = vrot.slane %v784, %v912
      %v914 = vlaneseq
      %v915 = vshrl.u32 %v914, 7
      %v916 = vsub.s32 0, %v915
      %v917 = vrot.slane %v792, %v916
      %v918 = vlaneseq
      %v919 = vshrl.u32 %v918, 7
      %v920 = vsub.s32 0, %v919
      %v921 = vrot.slane %v791, %v920
      %v922 = vlaneseq
      %v923 = vshrl.u32 %v922, 7
      %v924 = vsub.s32 0, %v923
      %v925 = vrot.slane %v793, %v924
      %v926 = vlaneseq
      %v927 = vshrl.u32 %v926, 7
      %v928 = vsub.s32 0, %v927
      %v929 = vrot.slane %v801, %v928
      %v930 = vlaneseq
      %v931 = vshrl.u32 %v930, 7
      %v932 = vsub.s32 0, %v931
      %v933 = vrot.slane %v809, %v932
      %v934 = vlaneseq
      %v935 = vshrl.u32 %v934, 7
      %v936 = vsub.s32 0, %v935
      %v937 = vrot.slane %v808, %v936
      %v938 = vlaneseq
      %v939 = vshrl.u32 %v938, 7
      %v940 = vsub.s32 0, %v939
      %v941 = vrot.slane %v810, %v940
      %v942 = vlaneseq
      %v943 = vshrl.u32 %v942, 7
      %v944 = vsub.s32 0, %v943
      %v945 = vrot.slane %v818, %v944
      %v946 = vlaneseq
      %v947 = vshrl.u32 %v946, 7
      %v948 = vsub.s32 0, %v947
      %v949 = vrot.slane %v826, %v948
      %v950 = vlaneseq
      %v951 = vshrl.u32 %v950, 7
      %v952 = vsub.s32 0, %v951
      %v953 = vrot.slane %v825, %v952
      %v954 = vlaneseq
      %v955 = vshrl.u32 %v954, 7
      %v956 = vsub.s32 0, %v955
      %v957 = vrot.slane %v827, %v956
      %v958 = vlaneseq
      %v959 = vshrl.u32 %v958, 7
      %v960 = vsub.s32 0, %v959
      %v961 = vrot.slane %v835, %v960
      %v962 = vlaneseq
      %v963 = vshrl.u32 %v962, 7
      %v964 = vsub.s32 0, %v963
      %v965 = vrot.slane %v843, %v964
      %v966 = vlaneseq
      %v967 = vshrl.u32 %v966, 7
      %v968 = vsub.s32 0, %v967
      %v969 = vrot.slane %v842, %v968
      %v970 = vlaneseq
      %v971 = vshrl.u32 %v970, 7
      %v972 = vsub.s32 0, %v971
      %v973 = vrot.slane %v844, %v972
      %v974 = vlaneseq
      %v975 = vshrl.u32 %v974, 7
      %v976 = vsub.s32 0, %v975
      %v977 = vrot.slane %v852, %v976
      %v978 = vlaneseq
      %v979 = vshrl.u32 %v978, 7
      %v980 = vsub.s32 0, %v979
      %v981 = vrot.slane %v860, %v980
      %v982 = vlaneseq
      %v983 = vshrl.u32 %v982, 7
      %v984 = vsub.s32 0, %v983
      %v985 = vrot.slane %v859, %v984
      %v986 = vlaneseq
      %v987 = vshrl.u32 %v986, 7
      %v988 = vsub.s32 0, %v987
      %v989 = vrot.slane %v861, %v988
      %vm990 = vcmask 1041409
      %v991 = vsel %vm990, %v869, %v865
      %vm992 = vcmask 1042434
      %v993 = vsel %vm992, %v873, %v991
      %vm994 = vcmask 1043459
      %v995 = vsel %vm994, %v877, %v993
      %v996 = vsel %vm990, %v885, %v881
      %v997 = vsel %vm992, %v889, %v996
      %v998 = vsel %vm994, %v893, %v997
      %v999 = vsel %vm990, %v901, %v897
      %v1000 = vsel %vm992, %v905, %v999
      %v1001 = vsel %vm994, %v909, %v1000
      %v1002 = vsel %vm990, %v917, %v913
      %v1003 = vsel %vm992, %v921, %v1002
      %v1004 = vsel %vm994, %v925, %v1003
      %v1005 = vsel %vm990, %v933, %v929
      %v1006 = vsel %vm992, %v937, %v1005
      %v1007 = vsel %vm994, %v941, %v1006
      %v1008 = vsel %vm990, %v949, %v945
      %v1009 = vsel %vm992, %v953, %v1008
      %v1010 = vsel %vm994, %v957, %v1009
      %v1011 = vsel %vm990, %v965, %v961
      %v1012 = vsel %vm992, %v969, %v1011
      %v1013 = vsel %vm994, %v973, %v1012
      %v1014 = vsel %vm990, %v981, %v977
      %v1015 = vsel %vm992, %v985, %v1014
      %v1016 = vsel %vm994, %v989, %v1015
      %v1025 = vlaneseq
      %v1026 = vshrl.u32 %v1025, 7
      %v1027 = vsub.s32 1, %v1026
      %v1028 = vrot.slane %v733, %v1027
      %v1029 = vlaneseq
      %v1030 = vshrl.u32 %v1029, 7
      %v1031 = vsub.s32 1, %v1030
      %v1032 = vrot.slane %v741, %v1031
      %v1033 = vlaneseq
      %v1034 = vshrl.u32 %v1033, 7
      %v1035 = vsub.s32 1, %v1034
      %v1036 = vrot.slane %v740, %v1035
      %v1037 = vlaneseq
      %v1038 = vshrl.u32 %v1037, 7
      %v1039 = vsub.s32 1, %v1038
      %v1040 = vrot.slane %v742, %v1039
      %v1041 = vlaneseq
      %v1042 = vshrl.u32 %v1041, 7
      %v1043 = vsub.s32 1, %v1042
      %v1044 = vrot.slane %v750, %v1043
      %v1045 = vlaneseq
      %v1046 = vshrl.u32 %v1045, 7
      %v1047 = vsub.s32 1, %v1046
      %v1048 = vrot.slane %v758, %v1047
      %v1049 = vlaneseq
      %v1050 = vshrl.u32 %v1049, 7
      %v1051 = vsub.s32 1, %v1050
      %v1052 = vrot.slane %v757, %v1051
      %v1053 = vlaneseq
      %v1054 = vshrl.u32 %v1053, 7
      %v1055 = vsub.s32 1, %v1054
      %v1056 = vrot.slane %v759, %v1055
      %v1057 = vlaneseq
      %v1058 = vshrl.u32 %v1057, 7
      %v1059 = vsub.s32 1, %v1058
      %v1060 = vrot.slane %v767, %v1059
      %v1061 = vlaneseq
      %v1062 = vshrl.u32 %v1061, 7
      %v1063 = vsub.s32 1, %v1062
      %v1064 = vrot.slane %v775, %v1063
      %v1065 = vlaneseq
      %v1066 = vshrl.u32 %v1065, 7
      %v1067 = vsub.s32 1, %v1066
      %v1068 = vrot.slane %v774, %v1067
      %v1069 = vlaneseq
      %v1070 = vshrl.u32 %v1069, 7
      %v1071 = vsub.s32 1, %v1070
      %v1072 = vrot.slane %v776, %v1071
      %v1073 = vlaneseq
      %v1074 = vshrl.u32 %v1073, 7
      %v1075 = vsub.s32 1, %v1074
      %v1076 = vrot.slane %v784, %v1075
      %v1077 = vlaneseq
      %v1078 = vshrl.u32 %v1077, 7
      %v1079 = vsub.s32 1, %v1078
      %v1080 = vrot.slane %v792, %v1079
      %v1081 = vlaneseq
      %v1082 = vshrl.u32 %v1081, 7
      %v1083 = vsub.s32 1, %v1082
      %v1084 = vrot.slane %v791, %v1083
      %v1085 = vlaneseq
      %v1086 = vshrl.u32 %v1085, 7
      %v1087 = vsub.s32 1, %v1086
      %v1088 = vrot.slane %v793, %v1087
      %v1089 = vlaneseq
      %v1090 = vshrl.u32 %v1089, 7
      %v1091 = vsub.s32 1, %v1090
      %v1092 = vrot.slane %v801, %v1091
      %v1093 = vlaneseq
      %v1094 = vshrl.u32 %v1093, 7
      %v1095 = vsub.s32 1, %v1094
      %v1096 = vrot.slane %v809, %v1095
      %v1097 = vlaneseq
      %v1098 = vshrl.u32 %v1097, 7
      %v1099 = vsub.s32 1, %v1098
      %v1100 = vrot.slane %v808, %v1099
      %v1101 = vlaneseq
      %v1102 = vshrl.u32 %v1101, 7
      %v1103 = vsub.s32 1, %v1102
      %v1104 = vrot.slane %v810, %v1103
      %v1105 = vlaneseq
      %v1106 = vshrl.u32 %v1105, 7
      %v1107 = vsub.s32 1, %v1106
      %v1108 = vrot.slane %v818, %v1107
      %v1109 = vlaneseq
      %v1110 = vshrl.u32 %v1109, 7
      %v1111 = vsub.s32 1, %v1110
      %v1112 = vrot.slane %v826, %v1111
      %v1113 = vlaneseq
      %v1114 = vshrl.u32 %v1113, 7
      %v1115 = vsub.s32 1, %v1114
      %v1116 = vrot.slane %v825, %v1115
      %v1117 = vlaneseq
      %v1118 = vshrl.u32 %v1117, 7
      %v1119 = vsub.s32 1, %v1118
      %v1120 = vrot.slane %v827, %v1119
      %v1121 = vlaneseq
      %v1122 = vshrl.u32 %v1121, 7
      %v1123 = vsub.s32 1, %v1122
      %v1124 = vrot.slane %v835, %v1123
      %v1125 = vlaneseq
      %v1126 = vshrl.u32 %v1125, 7
      %v1127 = vsub.s32 1, %v1126
      %v1128 = vrot.slane %v843, %v1127
      %v1129 = vlaneseq
      %v1130 = vshrl.u32 %v1129, 7
      %v1131 = vsub.s32 1, %v1130
      %v1132 = vrot.slane %v842, %v1131
      %v1133 = vlaneseq
      %v1134 = vshrl.u32 %v1133, 7
      %v1135 = vsub.s32 1, %v1134
      %v1136 = vrot.slane %v844, %v1135
      %v1137 = vlaneseq
      %v1138 = vshrl.u32 %v1137, 7
      %v1139 = vsub.s32 1, %v1138
      %v1140 = vrot.slane %v852, %v1139
      %v1141 = vlaneseq
      %v1142 = vshrl.u32 %v1141, 7
      %v1143 = vsub.s32 1, %v1142
      %v1144 = vrot.slane %v860, %v1143
      %v1145 = vlaneseq
      %v1146 = vshrl.u32 %v1145, 7
      %v1147 = vsub.s32 1, %v1146
      %v1148 = vrot.slane %v859, %v1147
      %v1149 = vlaneseq
      %v1150 = vshrl.u32 %v1149, 7
      %v1151 = vsub.s32 1, %v1150
      %v1152 = vrot.slane %v861, %v1151
      %v1153 = vsel %vm990, %v1032, %v1028
      %v1154 = vsel %vm992, %v1036, %v1153
      %v1155 = vsel %vm994, %v1040, %v1154
      %v1156 = vsel %vm990, %v1048, %v1044
      %v1157 = vsel %vm992, %v1052, %v1156
      %v1158 = vsel %vm994, %v1056, %v1157
      %v1159 = vsel %vm990, %v1064, %v1060
      %v1160 = vsel %vm992, %v1068, %v1159
      %v1161 = vsel %vm994, %v1072, %v1160
      %v1162 = vsel %vm990, %v1080, %v1076
      %v1163 = vsel %vm992, %v1084, %v1162
      %v1164 = vsel %vm994, %v1088, %v1163
      %v1165 = vsel %vm990, %v1096, %v1092
      %v1166 = vsel %vm992, %v1100, %v1165
      %v1167 = vsel %vm994, %v1104, %v1166
      %v1168 = vsel %vm990, %v1112, %v1108
      %v1169 = vsel %vm992, %v1116, %v1168
      %v1170 = vsel %vm994, %v1120, %v1169
      %v1171 = vsel %vm990, %v1128, %v1124
      %v1172 = vsel %vm992, %v1132, %v1171
      %v1173 = vsel %vm994, %v1136, %v1172
      %v1174 = vsel %vm990, %v1144, %v1140
      %v1175 = vsel %vm992, %v1148, %v1174
      %v1176 = vsel %vm994, %v1152, %v1175
      %1177 = vrot.lane.b32.xlu0 %v1155, 16
      %v1178 = vpop.permute.xlu0 %1177
      %1179 = vrot.lane.b32.xlu0 %v1158, 16
      %v1180 = vpop.permute.xlu0 %1179
      %1181 = vrot.lane.b32.xlu0 %v1161, 16
      %v1182 = vpop.permute.xlu0 %1181
      %1183 = vrot.lane.b32.xlu0 %v1164, 16
      %v1184 = vpop.permute.xlu0 %1183
      %1185 = vrot.lane.b32.xlu0 %v1167, 16
      %v1186 = vpop.permute.xlu0 %1185
      %1187 = vrot.lane.b32.xlu0 %v1170, 16
      %v1188 = vpop.permute.xlu0 %1187
      %1189 = vrot.lane.b32.xlu0 %v1173, 16
      %v1190 = vpop.permute.xlu0 %1189
      %1191 = vrot.lane.b32.xlu0 %v1176, 16
      %v1192 = vpop.permute.xlu0 %1191
      %vm1201 = vcmask 130048
      %v1202 = vsel %vm1201, %v995, %v1178
      %v1203 = vsel %vm1201, %v998, %v1180
      %v1204 = vsel %vm1201, %v1001, %v1182
      %v1205 = vsel %vm1201, %v1004, %v1184
      %v1206 = vsel %vm1201, %v1007, %v1186
      %v1207 = vsel %vm1201, %v1010, %v1188
      %v1208 = vsel %vm1201, %v1013, %v1190
      %v1209 = vsel %vm1201, %v1016, %v1192
      %v1210 = vpack.c.bf16 %v1202, %v1202
      %v1211 = vpack.c.bf16 %v1203, %v1203
      %v1212 = vpack.c.bf16 %v1204, %v1204
      %v1213 = vpack.c.bf16 %v1205, %v1205
      %v1214 = vpack.c.bf16 %v1206, %v1206
      %v1215 = vpack.c.bf16 %v1207, %v1207
      %v1216 = vpack.c.bf16 %v1208, %v1208
      %v1217 = vpack.c.bf16 %v1209, %v1209
      %v1218 = vld [vmem:[%s3] sm:$0xf]
      %v1219 = vld [vmem:[%s3 + $0x4] sm:$0xf]
      %v1220 = vld [vmem:[%s3 + $0x8] sm:$0xf]
      %v1221 = vld [vmem:[%s3 + $0xc] sm:$0xf]
      %s1222 = scalar_lea.vmem %s3, 16
      %v1223 = vld [vmem:[%s1222] sm:$0xf]
      %v1224 = vld [vmem:[%s1222 + $0x4] sm:$0xf]
      %v1225 = vld [vmem:[%s1222 + $0x8] sm:$0xf]
      %v1226 = vld [vmem:[%s1222 + $0xc] sm:$0xf]
      %v1231 = vcombine.low %v1211, %v1213
      %v1232 = vcombine.low %v1215, %v1217
      %v1234 = vunpack.c.l.s4 1983009808
      %v1235 = vunpack.c.0.s8 %v1234
      %v1236 = vlaneseq
      %v1237 = vshrl.u32 %v1236, 7
      %v1238 = vsub.s32 %v1235, %v1237
      %v1239 = vrot.slane %v1231, %v1238
      %v1241 = vunpack.c.l.s4 1983009808
      %v1242 = vunpack.c.0.s8 %v1241
      %v1243 = vlaneseq
      %v1244 = vshrl.u32 %v1243, 7
      %v1245 = vsub.s32 %v1242, %v1244
      %v1246 = vrot.slane %v1232, %v1245
      %v1247 = vcombine.low %v1239, %v1246
      %v1252 = vunpack.c.l.b16 %v1223
      %v1253 = vunpack.c.l.b16 %v1224
      %v1254 = vunpack.c.l.b16 %v1225
      %v1255 = vunpack.c.l.b16 %v1226
      %v1256 = vpack.c.b16 %v1253, %v1252
      %v1257 = vpack.c.b16 %v1255, %v1254
      %vm1260 = vcmask 261120
      %v1262 = vsel %vm1260, %v1247, 0
      %1264 = vmatprep.subr.bf16.mxu0 0
      %1265 = vmatpush1.bf16.msra.mxu0 0
      %1266 = vmatprep.subr.bf16.mxu0 0
      %1267 = vmatpush1.bf16.msra.mxu0 0
      %1268 = vmatprep.subr.bf16.mxu0 0
      %1269 = vmatpush1.bf16.msra.mxu0 0
      %1270 = vmatprep.subr.bf16.mxu0 0
      %1271 = vmatpush1.bf16.msra.mxu0 0
      %1272 = vmatprep.subr.bf16.mxu0 0
      %1273 = vmatpush1.bf16.msra.mxu0 0
      %1274 = vmatprep.subr.bf16.mxu0 0
      %1275 = vmatpush1.bf16.msra.mxu0 0
      %1276 = vmatprep.subr.bf16.mxu0 0
      %1277 = vmatpush1.bf16.msra.mxu0 %v1257
      %1278 = vmatprep.subr.bf16.mxu0 0
      %1279 = vmatpush1.bf16.msra.mxu0 %v1256
      %1280 = vmatprep.subr.bf16.mxu0 0
      %1281 = vmatpush2.bf16.msra.mxu0 0
      %1282 = vmatprep.subr.bf16.mxu0 0
      %1283 = vmatpush2.bf16.msra.mxu0 0
      %1284 = vmatprep.subr.bf16.mxu0 0
      %1285 = vmatpush2.bf16.msra.mxu0 0
      %1286 = vmatprep.subr.bf16.mxu0 0
      %1287 = vmatpush2.bf16.msra.mxu0 0
      %1288 = vmatprep.subr.bf16.mxu0 0
      %1289 = vmatpush2.bf16.msra.mxu0 0
      %1290 = vmatprep.subr.bf16.mxu0 0
      %1291 = vmatpush2.bf16.msra.mxu0 0
      %1292 = vmatprep.subr.bf16.mxu0 0
      %1293 = vmatpush2.bf16.msra.mxu0 0
      %1294 = vmatprep.subr.bf16.mxu0 0
      %1295 = vmatpush2.bf16.msra.mxu0 0
      %1296 = vmatprep.mubr.bf16.mxu0 0
      %1297 = vmatmul.mubr.bf16.gmra.mxu0 %v1262
      %v1298 = vpop.f32.mrf.mxu0
      %v1299 = vadd.f32 0.0, %v1298
      %v1300 = vpop.f32.mrf.mxu0
      %v1301 = vpop.f32.mrf.mxu0
      %v1302 = vadd.f32 0.0, %v1301
      %v1303 = vpop.f32.mrf.mxu0
      %1304 = vdwg.mxu0
      %v1309 = vcombine.low %v1210, %v1212
      %v1310 = vcombine.low %v1214, %v1216
      %v1312 = vunpack.c.l.s4 1983009808
      %v1313 = vunpack.c.0.s8 %v1312
      %v1314 = vlaneseq
      %v1315 = vshrl.u32 %v1314, 7
      %v1316 = vsub.s32 %v1313, %v1315
      %v1317 = vrot.slane %v1309, %v1316
      %v1319 = vunpack.c.l.s4 1983009808
      %v1320 = vunpack.c.0.s8 %v1319
      %v1321 = vlaneseq
      %v1322 = vshrl.u32 %v1321, 7
      %v1323 = vsub.s32 %v1320, %v1322
      %v1324 = vrot.slane %v1310, %v1323
      %v1325 = vcombine.low %v1317, %v1324
      %v1330 = vunpack.c.l.b16 %v1218
      %v1331 = vunpack.c.l.b16 %v1219
      %v1332 = vunpack.c.l.b16 %v1220
      %v1333 = vunpack.c.l.b16 %v1221
      %v1334 = vpack.c.b16 %v1331, %v1330
      %v1335 = vpack.c.b16 %v1333, %v1332
      %v1339 = vsel %vm1260, %v1325, 0
      %1341 = vmatprep.subr.bf16.mxu0 0
      %1342 = vmatpush1.bf16.msra.mxu0 0
      %1343 = vmatprep.subr.bf16.mxu0 0
      %1344 = vmatpush1.bf16.msra.mxu0 0
      %1345 = vmatprep.subr.bf16.mxu0 0
      %1346 = vmatpush1.bf16.msra.mxu0 0
      %1347 = vmatprep.subr.bf16.mxu0 0
      %1348 = vmatpush1.bf16.msra.mxu0 0
      %1349 = vmatprep.subr.bf16.mxu0 0
      %1350 = vmatpush1.bf16.msra.mxu0 0
      %1351 = vmatprep.subr.bf16.mxu0 0
      %1352 = vmatpush1.bf16.msra.mxu0 0
      %1353 = vmatprep.subr.bf16.mxu0 0
      %1354 = vmatpush1.bf16.msra.mxu0 %v1335
      %1355 = vmatprep.subr.bf16.mxu0 0
      %1356 = vmatpush1.bf16.msra.mxu0 %v1334
      %1357 = vmatprep.subr.bf16.mxu0 0
      %1358 = vmatpush2.bf16.msra.mxu0 0
      %1359 = vmatprep.subr.bf16.mxu0 0
      %1360 = vmatpush2.bf16.msra.mxu0 0
      %1361 = vmatprep.subr.bf16.mxu0 0
      %1362 = vmatpush2.bf16.msra.mxu0 0
      %1363 = vmatprep.subr.bf16.mxu0 0
      %1364 = vmatpush2.bf16.msra.mxu0 0
      %1365 = vmatprep.subr.bf16.mxu0 0
      %1366 = vmatpush2.bf16.msra.mxu0 0
      %1367 = vmatprep.subr.bf16.mxu0 0
      %1368 = vmatpush2.bf16.msra.mxu0 0
      %1369 = vmatprep.subr.bf16.mxu0 0
      %1370 = vmatpush2.bf16.msra.mxu0 0
      %1371 = vmatprep.subr.bf16.mxu0 0
      %1372 = vmatpush2.bf16.msra.mxu0 0
      %1373 = vmatprep.mubr.bf16.mxu0 0
      %1374 = vmatmul.mubr.bf16.gmra.mxu0 %v1339
      %v1375 = vpop.f32.mrf.mxu0
      %v1376 = vadd.f32 %v1299, %v1375
      %v1377 = vpop.f32.mrf.mxu0
      %v1378 = vpop.f32.mrf.mxu0
      %v1379 = vadd.f32 %v1302, %v1378
      %v1380 = vpop.f32.mrf.mxu0
      %1381 = vdwg.mxu0
      %v1382 = vld [vmem:[%s4] sm:$0x1]
      %v1384 = vlaneseq
      %v1385 = vshrl.u32 %v1384, 7
      %v1386 = vsub.s32 0, %v1385
      %v1387 = vrot.slane %v1382, %v1386
      %v1389 = vadd.f32 %v1376, %v1387
      %v1390 = vadd.f32 %v1379, %v1387
      %v1391 = vsub.f32 0.0, %v1389
      %v1392 = vsub.f32 0.0, %v1390
      %v1393 = vmul.f32 %v1391, 1.442695
      %v1394 = vpow.pop %v1393
      %v1395 = vmul.f32 %v1392, 1.442695
      %v1396 = vpow.pop %v1395
      %v1397 = vadd.f32 %v1394, 1.0
      %v1398 = vadd.f32 %v1396, 1.0
      %v1399 = vrcp.pop %v1397
      %v1400 = vmul.f32 1.0, %v1399
      %v1401 = vrcp.pop %v1398
      %v1402 = vmul.f32 1.0, %v1401
      %v1405 = vcombine.high %v1400, %v1400
      %v1407 = vunpack.c.l.s4 1983009808
      %v1408 = vunpack.c.0.s8 %v1407
      %v1409 = vlaneseq
      %v1410 = vshrl.u32 %v1409, 7
      %v1411 = vsub.s32 %v1408, %v1410
      %v1412 = vrot.slane %v1400, %v1411
      %v1414 = vunpack.c.l.s4 1983009808
      %v1415 = vunpack.c.0.s8 %v1414
      %v1416 = vlaneseq
      %v1417 = vshrl.u32 %v1416, 7
      %v1418 = vsub.s32 %v1415, %v1417
      %v1419 = vrot.slane %v1405, %v1418
      %v1420 = vcombine.high %v1412, %v1412
      %v1421 = vcombine.high %v1419, %v1419
      %v1422 = vcombine.high %v1402, %v1402
      %v1424 = vunpack.c.l.s4 1983009808
      %v1425 = vunpack.c.0.s8 %v1424
      %v1426 = vlaneseq
      %v1427 = vshrl.u32 %v1426, 7
      %v1428 = vsub.s32 %v1425, %v1427
      %v1429 = vrot.slane %v1402, %v1428
      %v1431 = vunpack.c.l.s4 1983009808
      %v1432 = vunpack.c.0.s8 %v1431
      %v1433 = vlaneseq
      %v1434 = vshrl.u32 %v1433, 7
      %v1435 = vsub.s32 %v1432, %v1434
      %v1436 = vrot.slane %v1422, %v1435
      %v1437 = vcombine.high %v1429, %v1429
      %v1438 = vcombine.high %v1436, %v1436
      %v1439 = vlaneseq
      %v1440 = vshrl.u32 %v1439, 7
      %v1441 = vsub.s32 0, %v1440
      %v1442 = vrot.slane %v1412, %v1441
      %v1443 = vlaneseq
      %v1444 = vshrl.u32 %v1443, 7
      %v1445 = vsub.s32 0, %v1444
      %v1446 = vrot.slane %v1420, %v1445
      %v1447 = vlaneseq
      %v1448 = vshrl.u32 %v1447, 7
      %v1449 = vsub.s32 0, %v1448
      %v1450 = vrot.slane %v1419, %v1449
      %v1451 = vlaneseq
      %v1452 = vshrl.u32 %v1451, 7
      %v1453 = vsub.s32 0, %v1452
      %v1454 = vrot.slane %v1421, %v1453
      %v1455 = vlaneseq
      %v1456 = vshrl.u32 %v1455, 7
      %v1457 = vsub.s32 0, %v1456
      %v1458 = vrot.slane %v1429, %v1457
      %v1459 = vlaneseq
      %v1460 = vshrl.u32 %v1459, 7
      %v1461 = vsub.s32 0, %v1460
      %v1462 = vrot.slane %v1437, %v1461
      %v1463 = vlaneseq
      %v1464 = vshrl.u32 %v1463, 7
      %v1465 = vsub.s32 0, %v1464
      %v1466 = vrot.slane %v1436, %v1465
      %v1467 = vlaneseq
      %v1468 = vshrl.u32 %v1467, 7
      %v1469 = vsub.s32 0, %v1468
      %v1470 = vrot.slane %v1438, %v1469
      %v1471 = vsel %vm990, %v1446, %v1442
      %v1472 = vsel %vm990, %v1454, %v1450
      %v1473 = vsel %vm990, %v1462, %v1458
      %v1474 = vsel %vm990, %v1470, %v1466
      %v1479 = vlaneseq
      %v1480 = vshrl.u32 %v1479, 7
      %v1481 = vsub.s32 1, %v1480
      %v1482 = vrot.slane %v1412, %v1481
      %v1483 = vlaneseq
      %v1484 = vshrl.u32 %v1483, 7
      %v1485 = vsub.s32 1, %v1484
      %v1486 = vrot.slane %v1420, %v1485
      %v1487 = vlaneseq
      %v1488 = vshrl.u32 %v1487, 7
      %v1489 = vsub.s32 1, %v1488
      %v1490 = vrot.slane %v1419, %v1489
      %v1491 = vlaneseq
      %v1492 = vshrl.u32 %v1491, 7
      %v1493 = vsub.s32 1, %v1492
      %v1494 = vrot.slane %v1421, %v1493
      %v1495 = vlaneseq
      %v1496 = vshrl.u32 %v1495, 7
      %v1497 = vsub.s32 1, %v1496
      %v1498 = vrot.slane %v1429, %v1497
      %v1499 = vlaneseq
      %v1500 = vshrl.u32 %v1499, 7
      %v1501 = vsub.s32 1, %v1500
      %v1502 = vrot.slane %v1437, %v1501
      %v1503 = vlaneseq
      %v1504 = vshrl.u32 %v1503, 7
      %v1505 = vsub.s32 1, %v1504
      %v1506 = vrot.slane %v1436, %v1505
      %v1507 = vlaneseq
      %v1508 = vshrl.u32 %v1507, 7
      %v1509 = vsub.s32 1, %v1508
      %v1510 = vrot.slane %v1438, %v1509
      %v1511 = vsel %vm990, %v1486, %v1482
      %v1512 = vsel %vm990, %v1494, %v1490
      %v1513 = vsel %vm990, %v1502, %v1498
      %v1514 = vsel %vm990, %v1510, %v1506
      %1515 = vrot.lane.b32.xlu0 %v1511, 8
      %v1516 = vpop.permute.xlu0 %1515
      %1517 = vrot.lane.b32.xlu0 %v1512, 8
      %v1518 = vpop.permute.xlu0 %1517
      %1519 = vrot.lane.b32.xlu0 %v1513, 8
      %v1520 = vpop.permute.xlu0 %1519
      %1521 = vrot.lane.b32.xlu0 %v1514, 8
      %v1522 = vpop.permute.xlu0 %1521
      %vm1527 = vcmask 64512
      %v1528 = vsel %vm1527, %v1471, %v1516
      %v1529 = vsel %vm1527, %v1472, %v1518
      %v1530 = vsel %vm1527, %v1473, %v1520
      %v1531 = vsel %vm1527, %v1474, %v1522
      %v1532 = vpack.c.bf16 %v1528, %v1528
      %v1533 = vpack.c.bf16 %v1529, %v1529
      %v1534 = vpack.c.bf16 %v1530, %v1530
      %v1535 = vpack.c.bf16 %v1531, %v1531
      %v1536 = vld [vmem:[%s5] sm:$0xf]
      %v1537 = vld [vmem:[%s5 + $0x4] sm:$0xf]
      %s1538 = scalar_lea.vmem %s5, 8
      %v1539 = vld [vmem:[%s1538] sm:$0xf]
      %v1540 = vld [vmem:[%s1538 + $0x4] sm:$0xf]
      %v1543 = vcombine.low %v1533, %v1535
      %v1545 = vunpack.c.l.s4 1966171168
      %v1546 = vunpack.c.0.s8 %v1545
      %v1547 = vlaneseq
      %v1548 = vshrl.u32 %v1547, 7
      %v1549 = vsub.s32 %v1546, %v1548
      %v1550 = vrot.slane %v1543, %v1549
      %v1552 = vunpack.c.l.s4 1966171168
      %v1553 = vunpack.c.0.s8 %v1552
      %v1554 = vlaneseq
      %v1555 = vshrl.u32 %v1554, 7
      %v1556 = vsub.s32 %v1553, %v1555
      %v1557 = vrot.slane %v1550, %v1556
      %v1560 = vunpack.c.l.b16 %v1539
      %v1561 = vunpack.c.l.b16 %v1540
      %v1562 = vpack.c.b16 %v1561, %v1560
      %v1565 = vsel %vm1201, %v1557, 0
      %1567 = vmatprep.subr.bf16.mxu0 0
      %1568 = vmatpush1.bf16.msra.mxu0 0
      %1569 = vmatprep.subr.bf16.mxu0 0
      %1570 = vmatpush1.bf16.msra.mxu0 0
      %1571 = vmatprep.subr.bf16.mxu0 0
      %1572 = vmatpush1.bf16.msra.mxu0 0
      %1573 = vmatprep.subr.bf16.mxu0 0
      %1574 = vmatpush1.bf16.msra.mxu0 0
      %1575 = vmatprep.subr.bf16.mxu0 0
      %1576 = vmatpush1.bf16.msra.mxu0 0
      %1577 = vmatprep.subr.bf16.mxu0 0
      %1578 = vmatpush1.bf16.msra.mxu0 0
      %1579 = vmatprep.subr.bf16.mxu0 0
      %1580 = vmatpush1.bf16.msra.mxu0 0
      %1581 = vmatprep.subr.bf16.mxu0 0
      %1582 = vmatpush1.bf16.msra.mxu0 %v1562
      %1583 = vmatprep.subr.bf16.mxu0 0
      %1584 = vmatpush2.bf16.msra.mxu0 0
      %1585 = vmatprep.subr.bf16.mxu0 0
      %1586 = vmatpush2.bf16.msra.mxu0 0
      %1587 = vmatprep.subr.bf16.mxu0 0
      %1588 = vmatpush2.bf16.msra.mxu0 0
      %1589 = vmatprep.subr.bf16.mxu0 0
      %1590 = vmatpush2.bf16.msra.mxu0 0
      %1591 = vmatprep.subr.bf16.mxu0 0
      %1592 = vmatpush2.bf16.msra.mxu0 0
      %1593 = vmatprep.subr.bf16.mxu0 0
      %1594 = vmatpush2.bf16.msra.mxu0 0
      %1595 = vmatprep.subr.bf16.mxu0 0
      %1596 = vmatpush2.bf16.msra.mxu0 0
      %1597 = vmatprep.subr.bf16.mxu0 0
      %1598 = vmatpush2.bf16.msra.mxu0 0
      %1599 = vmatprep.mubr.bf16.mxu0 0
      %1600 = vmatmul.mubr.bf16.gmra.mxu0 %v1565
      %v1601 = vpop.f32.mrf.mxu0
      %v1602 = vadd.f32 0.0, %v1601
      %v1603 = vpop.f32.mrf.mxu0
      %v1604 = vpop.f32.mrf.mxu0
      %v1605 = vpop.f32.mrf.mxu0
      %1606 = vdwg.mxu0
      %v1609 = vcombine.low %v1532, %v1534
      %v1611 = vunpack.c.l.s4 1966171168
      %v1612 = vunpack.c.0.s8 %v1611
      %v1613 = vlaneseq
      %v1614 = vshrl.u32 %v1613, 7
      %v1615 = vsub.s32 %v1612, %v1614
      %v1616 = vrot.slane %v1609, %v1615
      %v1618 = vunpack.c.l.s4 1966171168
      %v1619 = vunpack.c.0.s8 %v1618
      %v1620 = vlaneseq
      %v1621 = vshrl.u32 %v1620, 7
      %v1622 = vsub.s32 %v1619, %v1621
      %v1623 = vrot.slane %v1616, %v1622
      %v1626 = vunpack.c.l.b16 %v1536
      %v1627 = vunpack.c.l.b16 %v1537
      %v1628 = vpack.c.b16 %v1627, %v1626
      %v1631 = vsel %vm1201, %v1623, 0
      %1633 = vmatprep.subr.bf16.mxu0 0
      %1634 = vmatpush1.bf16.msra.mxu0 0
      %1635 = vmatprep.subr.bf16.mxu0 0
      %1636 = vmatpush1.bf16.msra.mxu0 0
      %1637 = vmatprep.subr.bf16.mxu0 0
      %1638 = vmatpush1.bf16.msra.mxu0 0
      %1639 = vmatprep.subr.bf16.mxu0 0
      %1640 = vmatpush1.bf16.msra.mxu0 0
      %1641 = vmatprep.subr.bf16.mxu0 0
      %1642 = vmatpush1.bf16.msra.mxu0 0
      %1643 = vmatprep.subr.bf16.mxu0 0
      %1644 = vmatpush1.bf16.msra.mxu0 0
      %1645 = vmatprep.subr.bf16.mxu0 0
      %1646 = vmatpush1.bf16.msra.mxu0 0
      %1647 = vmatprep.subr.bf16.mxu0 0
      %1648 = vmatpush1.bf16.msra.mxu0 %v1628
      %1649 = vmatprep.subr.bf16.mxu0 0
      %1650 = vmatpush2.bf16.msra.mxu0 0
      %1651 = vmatprep.subr.bf16.mxu0 0
      %1652 = vmatpush2.bf16.msra.mxu0 0
      %1653 = vmatprep.subr.bf16.mxu0 0
      %1654 = vmatpush2.bf16.msra.mxu0 0
      %1655 = vmatprep.subr.bf16.mxu0 0
      %1656 = vmatpush2.bf16.msra.mxu0 0
      %1657 = vmatprep.subr.bf16.mxu0 0
      %1658 = vmatpush2.bf16.msra.mxu0 0
      %1659 = vmatprep.subr.bf16.mxu0 0
      %1660 = vmatpush2.bf16.msra.mxu0 0
      %1661 = vmatprep.subr.bf16.mxu0 0
      %1662 = vmatpush2.bf16.msra.mxu0 0
      %1663 = vmatprep.subr.bf16.mxu0 0
      %1664 = vmatpush2.bf16.msra.mxu0 0
      %1665 = vmatprep.mubr.bf16.mxu0 0
      %1666 = vmatmul.mubr.bf16.gmra.mxu0 %v1631
      %v1667 = vpop.f32.mrf.mxu0
      %v1668 = vadd.f32 %v1602, %v1667
      %v1669 = vpop.f32.mrf.mxu0
      %v1670 = vpop.f32.mrf.mxu0
      %v1671 = vpop.f32.mrf.mxu0
      %1672 = vdwg.mxu0
      %v1673 = vld [vmem:[%s6] sm:$0x1]
      %v1675 = vlaneseq
      %v1676 = vshrl.u32 %v1675, 7
      %v1677 = vsub.s32 0, %v1676
      %v1678 = vrot.slane %v1673, %v1677
      %v1680 = vadd.f32 %v1668, %v1678
      %v1681 = vsub.f32 0.0, %v1680
      %v1682 = vmul.f32 %v1681, 1.442695
      %v1683 = vpow.pop %v1682
      %v1684 = vadd.f32 %v1683, 1.0
      %v1685 = vrcp.pop %v1684
      %v1686 = vmul.f32 1.0, %v1685
      %v1689 = vunpack.c.l.s4 1983009808
      %v1690 = vunpack.c.0.s8 %v1689
      %v1691 = vlaneseq
      %v1692 = vshrl.u32 %v1691, 7
      %v1693 = vsub.s32 %v1690, %v1692
      %v1694 = vrot.slane %v1686, %v1693
      %v1695 = vcombine.high %v1694, %v1694
      %v1698 = vlaneseq
      %v1699 = vshrl.u32 %v1698, 7
      %v1700 = vsub.s32 1, %v1699
      %v1701 = vrot.slane %v1694, %v1700
      %v1702 = vlaneseq
      %v1703 = vshrl.u32 %v1702, 7
      %v1704 = vsub.s32 1, %v1703
      %v1705 = vrot.slane %v1695, %v1704
      %1706 = vrot.lane.b32.xlu0 %v1701, 4
      %v1707 = vpop.permute.xlu0 %1706
      %1708 = vrot.lane.b32.xlu0 %v1705, 4
      %v1709 = vpop.permute.xlu0 %1708
      %vm1712 = vcmask 31744
      %v1713 = vsel %vm1712, %v1694, %v1707
      %v1714 = vsel %vm1712, %v1695, %v1709
      %v1715 = vpack.c.bf16 %v1713, %v1713
      %v1716 = vpack.c.bf16 %v1714, %v1714
      %v1717 = vld [vmem:[%s7] sm:$0xf]
      %s1718 = scalar_lea.vmem %s7, 4
      %v1719 = vld [vmem:[%s1718] sm:$0xf]
      %v1721 = vsel %vm1527, %v1716, 0
      %vm1723 = vcmask 1043456
      %v1725 = vsel %vm1723, %v1719, 0
      %1727 = vmatprep.subr.bf16.mxu0 0
      %1728 = vmatpush1.bf16.msra.mxu0 0
      %1729 = vmatprep.subr.bf16.mxu0 0
      %1730 = vmatpush1.bf16.msra.mxu0 0
      %1731 = vmatprep.subr.bf16.mxu0 0
      %1732 = vmatpush1.bf16.msra.mxu0 0
      %1733 = vmatprep.subr.bf16.mxu0 0
      %1734 = vmatpush1.bf16.msra.mxu0 0
      %1735 = vmatprep.subr.bf16.mxu0 0
      %1736 = vmatpush1.bf16.msra.mxu0 0
      %1737 = vmatprep.subr.bf16.mxu0 0
      %1738 = vmatpush1.bf16.msra.mxu0 0
      %1739 = vmatprep.subr.bf16.mxu0 0
      %1740 = vmatpush1.bf16.msra.mxu0 0
      %1741 = vmatprep.subr.bf16.mxu0 0
      %1742 = vmatpush1.bf16.msra.mxu0 %v1725
      %1743 = vmatprep.subr.bf16.mxu0 0
      %1744 = vmatpush2.bf16.msra.mxu0 0
      %1745 = vmatprep.subr.bf16.mxu0 0
      %1746 = vmatpush2.bf16.msra.mxu0 0
      %1747 = vmatprep.subr.bf16.mxu0 0
      %1748 = vmatpush2.bf16.msra.mxu0 0
      %1749 = vmatprep.subr.bf16.mxu0 0
      %1750 = vmatpush2.bf16.msra.mxu0 0
      %1751 = vmatprep.subr.bf16.mxu0 0
      %1752 = vmatpush2.bf16.msra.mxu0 0
      %1753 = vmatprep.subr.bf16.mxu0 0
      %1754 = vmatpush2.bf16.msra.mxu0 0
      %1755 = vmatprep.subr.bf16.mxu0 0
      %1756 = vmatpush2.bf16.msra.mxu0 0
      %1757 = vmatprep.subr.bf16.mxu0 0
      %1758 = vmatpush2.bf16.msra.mxu0 0
      %1759 = vmatprep.mubr.bf16.mxu0 0
      %1760 = vmatmul.mubr.bf16.gmra.mxu0 %v1721
      %v1761 = vpop.f32.mrf.mxu0
      %v1762 = vadd.f32 0.0, %v1761
      %v1763 = vpop.f32.mrf.mxu0
      %v1764 = vpop.f32.mrf.mxu0
      %v1765 = vpop.f32.mrf.mxu0
      %1766 = vdwg.mxu0
      %v1768 = vsel %vm1527, %v1715, 0
      %v1771 = vsel %vm1723, %v1717, 0
      %1773 = vmatprep.subr.bf16.mxu0 0
      %1774 = vmatpush1.bf16.msra.mxu0 0
      %1775 = vmatprep.subr.bf16.mxu0 0
      %1776 = vmatpush1.bf16.msra.mxu0 0
      %1777 = vmatprep.subr.bf16.mxu0 0
      %1778 = vmatpush1.bf16.msra.mxu0 0
      %1779 = vmatprep.subr.bf16.mxu0 0
      %1780 = vmatpush1.bf16.msra.mxu0 0
      %1781 = vmatprep.subr.bf16.mxu0 0
      %1782 = vmatpush1.bf16.msra.mxu0 0
      %1783 = vmatprep.subr.bf16.mxu0 0
      %1784 = vmatpush1.bf16.msra.mxu0 0
      %1785 = vmatprep.subr.bf16.mxu0 0
      %1786 = vmatpush1.bf16.msra.mxu0 0
      %1787 = vmatprep.subr.bf16.mxu0 0
      %1788 = vmatpush1.bf16.msra.mxu0 %v1771
      %1789 = vmatprep.subr.bf16.mxu0 0
      %1790 = vmatpush2.bf16.msra.mxu0 0
      %1791 = vmatprep.subr.bf16.mxu0 0
      %1792 = vmatpush2.bf16.msra.mxu0 0
      %1793 = vmatprep.subr.bf16.mxu0 0
      %1794 = vmatpush2.bf16.msra.mxu0 0
      %1795 = vmatprep.subr.bf16.mxu0 0
      %1796 = vmatpush2.bf16.msra.mxu0 0
      %1797 = vmatprep.subr.bf16.mxu0 0
      %1798 = vmatpush2.bf16.msra.mxu0 0
      %1799 = vmatprep.subr.bf16.mxu0 0
      %1800 = vmatpush2.bf16.msra.mxu0 0
      %1801 = vmatprep.subr.bf16.mxu0 0
      %1802 = vmatpush2.bf16.msra.mxu0 0
      %1803 = vmatprep.subr.bf16.mxu0 0
      %1804 = vmatpush2.bf16.msra.mxu0 0
      %1805 = vmatprep.mubr.bf16.mxu0 0
      %1806 = vmatmul.mubr.bf16.gmra.mxu0 %v1768
      %v1807 = vpop.f32.mrf.mxu0
      %v1808 = vadd.f32 %v1762, %v1807
      %v1809 = vpop.f32.mrf.mxu0
      %v1810 = vpop.f32.mrf.mxu0
      %v1811 = vpop.f32.mrf.mxu0
      %1812 = vdwg.mxu0
      %v1813 = vld [vmem:[#allocation2] sm:$0x1]
      %v1814 = vadd.f32 %v1808, %v1813
      %v1815 = vsub.f32 0.0, %v1814
      %v1816 = vmul.f32 %v1815, 1.442695
      %v1817 = vpow.pop %v1816
      %v1818 = vadd.f32 %v1817, 1.0
      %v1819 = vrcp.pop %v1818
      %v1820 = vmul.f32 1.0, %v1819
      %vm1821 = vcmask 0
      %1822 = vst.msk [vmem:[%s330] sm:$0x1] %vm1821, %v1820
      %p1823 = scmp.lt.s32.totalorder %s22, 1
      %s1824 = scalar_select %p1823, %s22, 1
      %s1825 = scalar_lea.vmem %s9, %s1824
      // Predicated region
      $region57: #{fused_conv_net.1} parent=55 // pred_check
        %p1826 = pneg %p234
      $region58: #{fused_conv_net.1} parent=55 // pred_check_branch
        %1828 = sbr.rel (%p1826) target = $region60
      $region59: #{fused_conv_net.1} parent=55 // pred_region
        _
      $region60: #{fused_conv_net.1} parent=55 // pred_fallthru
        _
    $region56: #{fused_conv_net.1} parent=5 // pred_fallthru
      _
    %p1829 = scmp.le.s32.totalorder 2, %s17
    // Predicated region
    $region61: #{fused_conv_net.1} parent=5 // pred_check
      %p1830 = pneg %p1829
    $region62: #{fused_conv_net.1} parent=5 // pred_check_branch
      %1832 = sbr.rel (%p1830) target = $region64
    $region63: #{fused_conv_net.1} parent=5 // pred_region
      %s1833 = ssub.s32 %s17, 2
      // Predicated region
      $region65: #{fused_conv_net.1} parent=63 // pred_check
        %p1834 = pneg %p240
      $region66: #{fused_conv_net.1} parent=63 // pred_check_branch
        %1836 = sbr.rel (%p1834) target = $region68
      $region67: #{fused_conv_net.1} parent=63 // pred_region
        %p1837 = scmp.lt.s32.totalorder %s23, 1
        %s1838 = scalar_select %p1837, %s23, 1
        %s1839 = scalar_lea.vmem %s9, %s1838
      $region68: #{fused_conv_net.1} parent=63 // pred_fallthru
        _
    $region64: #{fused_conv_net.1} parent=5 // pred_fallthru
      _
  $region6: #{fused_conv_net.1} parent=0 // loop_footer
    %s21 = sadd.s32 1, %s17
  $region7: #{fused_conv_net.1} parent=0 // loop_footer_branch
    %16 = sbr.rel target = $region3
  $region8: #{fused_conv_net.1} parent=0 // loop_exit
    _

</llo_original>
